<compile_context>
chip_gen: v6e
topology: v6e:2x2x1
jax: 0.10.0
libtpu: 0.0.40
codegen_flags: <defaults>
</compile_context>

<pallas_src>
import functools

import jax
import jax.numpy as jnp
import numpy as np
from jax.experimental import pallas as pl
from jax.experimental.pallas import tpu as pltpu


# ----------------------------- fused Pallas kernel --------------------------

def _fused_kernel(h_out, n2, wcout,
                  x_ref, wbig_ref, bc_ref, w1_ref, b1_ref, w2_ref, b2_ref,
                  o_ref):
    """Both Siamese branches: conv(3x3,pad=1)+ReLU -> flatten -> MLP.

    Layout contract (kept in sync with siamese_forward()'s prep and
    prepare_params()):
      x_ref   : (2*N*H, KPAD) bf16   rows ordered (h, branch, n);
                                     K = kh*(W+2)*C + wp*C + c, zero-padded
      wbig_ref: (KPAD, W*COUT) bf16  banded conv weight (kh taps stacked in K)
      bc_ref  : (1, W*COUT) f32      conv bias tiled over w
      w1_ref  : (H, W*COUT, HIDDEN) bf16  first linear, NCHW flatten folded in
      b1_ref  : (1, HIDDEN) f32
      w2_ref  : (HIDDEN, OPAD=128) bf16   second linear, lane-padded
      b2_ref  : (1, OPAD) f32
      o_ref   : (2*N, OPAD) f32      rows ordered (branch, n)
    """
    # Conv as a single full-depth (K=256) MXU matmul over the in-lane im2col.
    conv = jnp.dot(x_ref[...], wbig_ref[...],
                   preferred_element_type=jnp.float32)        # (2N*H, W*COUT)
    # bf16 round of the conv activation is deliberate (MXU-native operand).
    conv = jnp.maximum(conv + bc_ref[...], 0.0).astype(jnp.bfloat16)

    # First linear: one H-batched matmul then a reduction over H.
    conv3 = conv.reshape(h_out, n2, wcout)                    # rows are (h, b, n)
    hid = jnp.einsum("hbk,hkj->hbj", conv3, w1_ref[...],
                     preferred_element_type=jnp.float32)      # (H, 2N, HIDDEN)
    hid = jnp.sum(hid, axis=0)                                # (2N, HIDDEN)
    hid = jnp.maximum(hid + b1_ref[...], 0.0).astype(jnp.bfloat16)

    # Second linear, lane-dense output (EMBED padded to 128 lanes).
    out = jnp.dot(hid, w2_ref[...],
                  preferred_element_type=jnp.float32) + b2_ref[...]
    o_ref[...] = out.astype(o_ref.dtype)


# ------------------------------- host-side prep ------------------------------

def prepare_params(wc_t, bc_t, w1_t, b1_t, w2_t, b2_t, *, H, W,
                   kpad=256, opad=128):
    """Convert PyTorch-layout parameters to the fused-kernel layouts.

    wc_t: (COUT, C, 3, 3)  Conv2d weight      bc_t: (COUT,)
    w1_t: (HIDDEN, COUT*H*W) Linear weight (out, in), NCHW-flatten input order
    b1_t: (HIDDEN,)         w2_t: (EMBED, HIDDEN)      b2_t: (EMBED,)
    """
    COUT, C, KH, KW = wc_t.shape
    HIDDEN = w1_t.shape[0]
    EMBED = w2_t.shape[0]
    WP = W + 2
    assert KH == 3 and KW == 3
    # The kernel's K layout is kh*WP*C + wp*C + c, zero-padded to kpad lanes.
    assert KH * WP * C <= kpad, "K = 3*(W+2)*C must fit in the padded lane dim"
    assert EMBED <= opad

    cw = np.asarray(wc_t, np.float32)                        # (co, c, kh, kw)
    # Banded conv weight: wbig[kh*WP*C + wp*C + c, w*COUT + co] = cw[co,c,kh,wp-w]
    wbig = np.zeros((kpad, W * COUT), np.float32)
    for kh in range(KH):
        for w in range(W):
            for kw in range(KW):
                wp = w + kw
                k0 = kh * WP * C + wp * C
                wbig[k0:k0 + C, w * COUT:(w + 1) * COUT] = cw[:, :, kh, kw].T

    bc = np.tile(np.asarray(bc_t, np.float32), W).reshape(1, W * COUT)

    # Fold the NCHW flatten (torch: feat index = co*H*W + h*W + w) into w1.
    w1 = np.asarray(w1_t, np.float32).reshape(HIDDEN, COUT, H, W)
    w1 = w1.transpose(2, 3, 1, 0).reshape(H, W * COUT, HIDDEN)  # [h, w*COUT+co, j]
    b1 = np.asarray(b1_t, np.float32).reshape(1, HIDDEN)

    # Lane-dense tail: pad EMBED -> opad so the final matmul/store is unmasked
    # in the lane dimension.
    w2 = np.zeros((HIDDEN, opad), np.float32)
    w2[:, :EMBED] = np.asarray(w2_t, np.float32).T
    b2 = np.zeros((1, opad), np.float32)
    b2[0, :EMBED] = np.asarray(b2_t, np.float32)

    return {
        "wbig": jnp.asarray(wbig, jnp.bfloat16),
        "bc": jnp.asarray(bc, jnp.float32),
        "w1": jnp.asarray(w1, jnp.bfloat16),
        "b1": jnp.asarray(b1, jnp.float32),
        "w2": jnp.asarray(w2, jnp.bfloat16),
        "b2": jnp.asarray(b2, jnp.float32),
    }


# --------------------------------- forward ----------------------------------

def siamese_forward(input1, input2, params, *, embed):
    """input1, input2: (N, C, H, W) f32 -> (out1, out2), each (N, embed) f32."""
    N, C, H, W = input1.shape
    KPAD, WCOUT = params["wbig"].shape
    HIDDEN = params["b1"].shape[1]
    OPAD = params["b2"].shape[1]
    KH = 3
    WP = W + 2

    # Build the conv LHS for BOTH branches at once.
    # Rows ordered (h, branch, n); K = kh*(W+2)*C + wp*C + c, zero-padded to
    # KPAD.  This layout MUST match prepare_params()'s wbig and the kernel's
    # conv3 reshape (h_out, 2N, WCOUT).
    x = jnp.stack([input1, input2], axis=0)                   # (2,N,C,H,W)
    x = jnp.transpose(x, (0, 1, 3, 4, 2))                     # (2,N,H,W,C)
    xp = jnp.pad(x, ((0, 0), (0, 0), (1, 1), (1, 1), (0, 0)))  # pad=1 on H,W
    taps = jnp.stack([xp[:, :, kh:kh + H] for kh in range(KH)], axis=3)
    # taps: (2,N,H,KH,W+2,C) -> (H,2,N,KH,W+2,C) -> (H*2*N, KH*(W+2)*C)
    lhs = jnp.transpose(taps, (2, 0, 1, 3, 4, 5)).reshape(H * 2 * N, KH * WP * C)
    lhs = jnp.pad(lhs, ((0, 0), (0, KPAD - KH * WP * C))).astype(jnp.bfloat16)

    kernel = functools.partial(_fused_kernel, H, 2 * N, WCOUT)

    flops = 2 * ((2 * N * H) * KPAD * WCOUT
                 + H * (2 * N) * WCOUT * HIDDEN
                 + (2 * N) * HIDDEN * OPAD)
    bytes_accessed = (lhs.size * 2 + params["wbig"].size * 2
                      + params["w1"].size * 2 + params["w2"].size * 2
                      + (params["bc"].size + params["b1"].size
                         + params["b2"].size) * 4
                      + 2 * N * OPAD * 4)

    out = pl.pallas_call(
        kernel,
        out_shape=jax.ShapeDtypeStruct((2 * N, OPAD), jnp.float32),
        grid=(1,),
        in_specs=[
            pl.BlockSpec((2 * N * H, KPAD), lambda i: (0, 0)),
            pl.BlockSpec((KPAD, WCOUT), lambda i: (0, 0)),
            pl.BlockSpec((1, WCOUT), lambda i: (0, 0)),
            pl.BlockSpec((H, WCOUT, HIDDEN), lambda i: (0, 0, 0)),
            pl.BlockSpec((1, HIDDEN), lambda i: (0, 0)),
            pl.BlockSpec((HIDDEN, OPAD), lambda i: (0, 0)),
            pl.BlockSpec((1, OPAD), lambda i: (0, 0)),
        ],
        out_specs=pl.BlockSpec((2 * N, OPAD), lambda i: (0, 0)),
        compiler_params=pltpu.CompilerParams(
            dimension_semantics=("arbitrary",)),
        cost_estimate=pl.CostEstimate(
            flops=flops, transcendentals=0, bytes_accessed=bytes_accessed),
    )(lhs, params["wbig"], params["bc"], params["w1"], params["b1"],
      params["w2"], params["b2"])

    # Rows (branch, n); lanes beyond `embed` are padding.
    return out[:N, :embed], out[N:, :embed]


# ------------------------- plain-JAX reference (check) -----------------------

def reference_forward_once(x, wc_t, bc_t, w1_t, b1_t, w2_t, b2_t):
    hi = jax.lax.Precision.HIGHEST
    r = lambda a: a.astype(jnp.bfloat16).astype(jnp.float32)  # emulate bf16 operands
    y = jax.lax.conv_general_dilated(
        r(x), r(wc_t), window_strides=(1, 1), padding=((1, 1), (1, 1)),
        dimension_numbers=("NCHW", "OIHW", "NCHW"), precision=hi)
    y = jnp.maximum(y + bc_t.reshape(1, -1, 1, 1), 0.0)
    feat = y.reshape(x.shape[0], -1)                          # torch .view(N, -1)
    h = jnp.maximum(jnp.dot(feat, r(w1_t).T, precision=hi) + b1_t, 0.0)
    return jnp.dot(h, r(w2_t).T, precision=hi) + b2_t


# ----------------------------------- main ------------------------------------

if __name__ == "__main__":
    N, C, H, W = 2, 4, 16, 16
    COUT, HIDDEN, EMBED = 8, 32, 16

    key = jax.random.PRNGKey(0)
    ks = jax.random.split(key, 8)

    # PyTorch-layout parameters (Conv2d: (COUT, C, 3, 3); Linear: (out, in)).
    wc_t = jax.random.normal(ks[0], (COUT, C, 3, 3), jnp.float32) * 0.05
    bc_t = jax.random.normal(ks[1], (COUT,), jnp.float32) * 0.05
    w1_t = jax.random.normal(ks[2], (HIDDEN, COUT * H * W), jnp.float32) * 0.02
    b1_t = jax.random.normal(ks[3], (HIDDEN,), jnp.float32) * 0.02
    w2_t = jax.random.normal(ks[4], (EMBED, HIDDEN), jnp.float32) * 0.1
    b2_t = jax.random.normal(ks[5], (EMBED,), jnp.float32) * 0.1

    params = prepare_params(wc_t, bc_t, w1_t, b1_t, w2_t, b2_t, H=H, W=W)

    x1 = jax.random.normal(ks[6], (N, C, H, W), jnp.float32)
    x2 = jax.random.normal(ks[7], (N, C, H, W), jnp.float32)

    fwd = jax.jit(functools.partial(siamese_forward, embed=EMBED))
    out1, out2 = fwd(x1, x2, params)
    jax.block_until_ready((out1, out2))

    assert out1.shape == (N, EMBED) and out2.shape == (N, EMBED)
    assert out1.dtype == jnp.float32 and out2.dtype == jnp.float32

    # Numerical check against a plain-JAX version of the PyTorch forward.
    ref1 = reference_forward_once(x1, wc_t, bc_t, w1_t, b1_t, w2_t, b2_t)
    ref2 = reference_forward_once(x2, wc_t, bc_t, w1_t, b1_t, w2_t, b2_t)
    assert jnp.allclose(out1, ref1, atol=5e-2, rtol=5e-2), \
        float(jnp.max(jnp.abs(out1 - ref1)))
    assert jnp.allclose(out2, ref2, atol=5e-2, rtol=5e-2), \
        float(jnp.max(jnp.abs(out2 - ref2)))

    print("KERNEL_OK")
</pallas_src>

<mosaic_0001>
module attributes {stable_mosaic.version = 11 : i64} {
  func.func @_fused_kernel(%arg0: i32, %arg1: memref<64x256xbf16, #tpu.memory_space<vmem>>, %arg2: memref<256x128xbf16, #tpu.memory_space<vmem>>, %arg3: memref<1x128xf32, #tpu.memory_space<vmem>>, %arg4: memref<16x128x32xbf16, #tpu.memory_space<vmem>>, %arg5: memref<1x32xf32, #tpu.memory_space<vmem>>, %arg6: memref<32x128xbf16, #tpu.memory_space<vmem>>, %arg7: memref<1x128xf32, #tpu.memory_space<vmem>>, %arg8: memref<4x128xf32, #tpu.memory_space<vmem>>) attributes {dimension_semantics = [#tpu.dimension_semantics<arbitrary>], iteration_bounds = array<i64: 1>, scalar_prefetch = 0 : i64, scratch_operands = 0 : i64, tpu.core_type = #tpu.core_type<tc>, window_params = [{pipeline_mode = #tpu.pipeline_mode<synchronous>, transform_indices = @transform_0, window_bounds = array<i64: 64, 256>}, {pipeline_mode = #tpu.pipeline_mode<synchronous>, transform_indices = @transform_1, window_bounds = array<i64: 256, 128>}, {pipeline_mode = #tpu.pipeline_mode<synchronous>, transform_indices = @transform_2, window_bounds = array<i64: 1, 128>}, {pipeline_mode = #tpu.pipeline_mode<synchronous>, transform_indices = @transform_3, window_bounds = array<i64: 16, 128, 32>}, {pipeline_mode = #tpu.pipeline_mode<synchronous>, transform_indices = @transform_4, window_bounds = array<i64: 1, 32>}, {pipeline_mode = #tpu.pipeline_mode<synchronous>, transform_indices = @transform_5, window_bounds = array<i64: 32, 128>}, {pipeline_mode = #tpu.pipeline_mode<synchronous>, transform_indices = @transform_6, window_bounds = array<i64: 1, 128>}, {pipeline_mode = #tpu.pipeline_mode<synchronous>, transform_indices = @transform_7, window_bounds = array<i64: 4, 128>}]} {
    %c0 = arith.constant 0 : index
    %c0_0 = arith.constant 0 : index
    %0 = vector.load %arg1[%c0, %c0_0] : memref<64x256xbf16, #tpu.memory_space<vmem>>, vector<64x256xbf16>
    %c0_1 = arith.constant 0 : index
    %c0_2 = arith.constant 0 : index
    %1 = vector.load %arg2[%c0_1, %c0_2] : memref<256x128xbf16, #tpu.memory_space<vmem>>, vector<256x128xbf16>
    %cst = arith.constant dense<0.000000e+00> : vector<64x128xf32>
    %2 = tpu.matmul %0, %1, %cst {dimension_numbers = #tpu.dot_dimension_numbers<[1], [0], [0], [1], [0, 0, 1, 1], [], []>} : vector<64x256xbf16>, vector<256x128xbf16>, vector<64x128xf32> -> vector<64x128xf32>
    %c0_3 = arith.constant 0 : index
    %c0_4 = arith.constant 0 : index
    %3 = vector.load %arg3[%c0_3, %c0_4] : memref<1x128xf32, #tpu.memory_space<vmem>>, vector<1x128xf32>
    %4 = vector.broadcast %3 : vector<1x128xf32> to vector<64x128xf32>
    %5 = arith.addf %2, %4 : vector<64x128xf32>
    %cst_5 = arith.constant 0.000000e+00 : f32
    %6 = vector.broadcast %cst_5 : f32 to vector<64x128xf32>
    %7 = arith.maximumf %5, %6 : vector<64x128xf32>
    %8 = arith.truncf %7 : vector<64x128xf32> to vector<64x128xbf16>
    %9 = vector.shape_cast %8 : vector<64x128xbf16> to vector<16x4x128xbf16>
    %c0_6 = arith.constant 0 : index
    %c0_7 = arith.constant 0 : index
    %c0_8 = arith.constant 0 : index
    %10 = vector.load %arg4[%c0_6, %c0_7, %c0_8] : memref<16x128x32xbf16, #tpu.memory_space<vmem>>, vector<16x128x32xbf16>
    "tpu.trace_start"() <{level = 10 : i32, message = "hbk,hkj->hbj"}> : () -> ()
    %cst_9 = arith.constant dense<0.000000e+00> : vector<16x4x32xf32>
    %11 = tpu.matmul %9, %10, %cst_9 {dimension_numbers = #tpu.dot_dimension_numbers<[2], [1], [1], [2], [0, 0, 0, 1, 1, 2], [0], [0]>} : vector<16x4x128xbf16>, vector<16x128x32xbf16>, vector<16x4x32xf32> -> vector<16x4x32xf32>
    "tpu.trace_stop"() : () -> ()
    %cst_10 = arith.constant dense<0.000000e+00> : vector<4x32xf32>
    %12 = vector.multi_reduction <add>, %11, %cst_10 [0] : vector<16x4x32xf32> to vector<4x32xf32>
    %c0_11 = arith.constant 0 : index
    %c0_12 = arith.constant 0 : index
    %13 = vector.load %arg5[%c0_11, %c0_12] : memref<1x32xf32, #tpu.memory_space<vmem>>, vector<1x32xf32>
    %14 = vector.broadcast %13 : vector<1x32xf32> to vector<4x32xf32>
    %15 = arith.addf %12, %14 : vector<4x32xf32>
    %cst_13 = arith.constant 0.000000e+00 : f32
    %16 = vector.broadcast %cst_13 : f32 to vector<4x32xf32>
    %17 = arith.maximumf %15, %16 : vector<4x32xf32>
    %18 = arith.truncf %17 : vector<4x32xf32> to vector<4x32xbf16>
    %c0_14 = arith.constant 0 : index
    %c0_15 = arith.constant 0 : index
    %19 = vector.load %arg6[%c0_14, %c0_15] : memref<32x128xbf16, #tpu.memory_space<vmem>>, vector<32x128xbf16>
    %cst_16 = arith.constant dense<0.000000e+00> : vector<4x128xf32>
    %20 = tpu.matmul %18, %19, %cst_16 {dimension_numbers = #tpu.dot_dimension_numbers<[1], [0], [0], [1], [0, 0, 1, 1], [], []>} : vector<4x32xbf16>, vector<32x128xbf16>, vector<4x128xf32> -> vector<4x128xf32>
    %c0_17 = arith.constant 0 : index
    %c0_18 = arith.constant 0 : index
    %21 = vector.load %arg7[%c0_17, %c0_18] : memref<1x128xf32, #tpu.memory_space<vmem>>, vector<1x128xf32>
    %22 = vector.broadcast %21 : vector<1x128xf32> to vector<4x128xf32>
    %23 = arith.addf %20, %22 : vector<4x128xf32>
    %c0_19 = arith.constant 0 : index
    %c0_20 = arith.constant 0 : index
    %24 = vector.load %arg8[%c0_19, %c0_20] : memref<4x128xf32, #tpu.memory_space<vmem>>, vector<4x128xf32>
    tpu.vector_store %arg8[%c0_19, %c0_20], %23 {strides = array<i32>} : memref<4x128xf32, #tpu.memory_space<vmem>>, vector<4x128xf32>,
    return
  }
  func.func @transform_0(%arg0: i32) -> (i32, i32) {
    %c0_i32 = arith.constant 0 : i32
    %c0_i32_0 = arith.constant 0 : i32
    %c0_i32_1 = arith.constant 0 : i32
    return %c0_i32, %c0_i32_0 : i32, i32
  }
  func.func @transform_1(%arg0: i32) -> (i32, i32) {
    %c0_i32 = arith.constant 0 : i32
    %c0_i32_0 = arith.constant 0 : i32
    %c0_i32_1 = arith.constant 0 : i32
    return %c0_i32, %c0_i32_0 : i32, i32
  }
  func.func @transform_2(%arg0: i32) -> (i32, i32) {
    %c0_i32 = arith.constant 0 : i32
    %c0_i32_0 = arith.constant 0 : i32
    %c0_i32_1 = arith.constant 0 : i32
    return %c0_i32, %c0_i32_0 : i32, i32
  }
  func.func @transform_3(%arg0: i32) -> (i32, i32, i32) {
    %c0_i32 = arith.constant 0 : i32
    %c0_i32_0 = arith.constant 0 : i32
    %c0_i32_1 = arith.constant 0 : i32
    %c0_i32_2 = arith.constant 0 : i32
    return %c0_i32, %c0_i32_0, %c0_i32_1 : i32, i32, i32
  }
  func.func @transform_4(%arg0: i32) -> (i32, i32) {
    %c0_i32 = arith.constant 0 : i32
    %c0_i32_0 = arith.constant 0 : i32
    %c0_i32_1 = arith.constant 0 : i32
    return %c0_i32, %c0_i32_0 : i32, i32
  }
  func.func @transform_5(%arg0: i32) -> (i32, i32) {
    %c0_i32 = arith.constant 0 : i32
    %c0_i32_0 = arith.constant 0 : i32
    %c0_i32_1 = arith.constant 0 : i32
    return %c0_i32, %c0_i32_0 : i32, i32
  }
  func.func @transform_6(%arg0: i32) -> (i32, i32) {
    %c0_i32 = arith.constant 0 : i32
    %c0_i32_0 = arith.constant 0 : i32
    %c0_i32_1 = arith.constant 0 : i32
    return %c0_i32, %c0_i32_0 : i32, i32
  }
  func.func @transform_7(%arg0: i32) -> (i32, i32) {
    %c0_i32 = arith.constant 0 : i32
    %c0_i32_0 = arith.constant 0 : i32
    %c0_i32_1 = arith.constant 0 : i32
    return %c0_i32, %c0_i32_0 : i32, i32
  }
}

</mosaic_0001>

<llo_original>
// kernel: siamese_forward.1
$region0: #{siamese_forward.1}
  #allocation0 [shape = 'u32[]', space=smem, size = 0x4, offset = 0x4, fixed_abs, tag = 'smem constant byte address 0x4 - core index']
  #allocation1 [shape = 'u32[144,128]{1,0:T(1,128)}', space=vmem, size = 0x12000, scoped, tag = 'internal scratch']
  %s0 = inlined_call_operand.vmem [shape: bf16[64,256], index: 0, kind: input, shape index: {}]
  %s1 = inlined_call_operand.vmem [shape: bf16[256,128], index: 1, kind: input, shape index: {}]
  %s2 = inlined_call_operand.vmem [shape: f32[1,128], index: 2, kind: input, shape index: {}]
  %s3 = inlined_call_operand.vmem [shape: bf16[16,128,32], index: 3, kind: input, shape index: {}]
  %s4 = inlined_call_operand.vmem [shape: f32[1,32], index: 4, kind: input, shape index: {}]
  %s5 = inlined_call_operand.vmem [shape: bf16[32,128], index: 5, kind: input, shape index: {}]
  %s6 = inlined_call_operand.vmem [shape: f32[1,128], index: 6, kind: input, shape index: {}]
  %s7 = inlined_call_operand.vmem [shape: f32[4,128], index: 7, kind: output, shape index: {}]
  %s8 = sld [smem:[#allocation0]]
  $region38: #{siamese_forward.1} parent=0
    _
  %s10 = ssub.s32 1, %s8
  %s11 = scalar_select 0, %s10, %s8
  // Predicated region
  $region2: #{siamese_forward.1} parent=0 // pred_check
    _
  $region3: #{siamese_forward.1} parent=0 // pred_check_branch
    %13 = sbr.rel (0) target = $region5
  $region4: #{siamese_forward.1} parent=0 // pred_region
    _
  $region5: #{siamese_forward.1} parent=0 // pred_fallthru
    _
  // Predicated region
  $region6: #{siamese_forward.1} parent=0 // pred_check
    _
  $region7: #{siamese_forward.1} parent=0 // pred_check_branch
    %15 = sbr.rel (0) target = $region9
  $region8: #{siamese_forward.1} parent=0 // pred_region
    _
  $region9: #{siamese_forward.1} parent=0 // pred_fallthru
    _
  // Predicated region
  $region10: #{siamese_forward.1} parent=0 // pred_check
    _
  $region11: #{siamese_forward.1} parent=0 // pred_check_branch
    %17 = sbr.rel (0) target = $region13
  $region12: #{siamese_forward.1} parent=0 // pred_region
    _
  $region13: #{siamese_forward.1} parent=0 // pred_fallthru
    _
  // Predicated region
  $region14: #{siamese_forward.1} parent=0 // pred_check
    _
  $region15: #{siamese_forward.1} parent=0 // pred_check_branch
    %19 = sbr.rel (0) target = $region17
  $region16: #{siamese_forward.1} parent=0 // pred_region
    _
  $region17: #{siamese_forward.1} parent=0 // pred_fallthru
    _
  // Predicated region
  $region18: #{siamese_forward.1} parent=0 // pred_check
    _
  $region19: #{siamese_forward.1} parent=0 // pred_check_branch
    %21 = sbr.rel (0) target = $region21
  $region20: #{siamese_forward.1} parent=0 // pred_region
    _
  $region21: #{siamese_forward.1} parent=0 // pred_fallthru
    _
  // Predicated region
  $region22: #{siamese_forward.1} parent=0 // pred_check
    _
  $region23: #{siamese_forward.1} parent=0 // pred_check_branch
    %23 = sbr.rel (0) target = $region25
  $region24: #{siamese_forward.1} parent=0 // pred_region
    _
  $region25: #{siamese_forward.1} parent=0 // pred_fallthru
    _
  // Predicated region
  $region26: #{siamese_forward.1} parent=0 // pred_check
    _
  $region27: #{siamese_forward.1} parent=0 // pred_check_branch
    %25 = sbr.rel (0) target = $region29
  $region28: #{siamese_forward.1} parent=0 // pred_region
    _
  $region29: #{siamese_forward.1} parent=0 // pred_fallthru
    _
  %v27 = vld [vmem:[%s0] sm:$0xff]
  %v28 = vld [vmem:[%s0 + $0x8] sm:$0xff]
  %v29 = vld [vmem:[%s0 + $0x10] sm:$0xff]
  %v30 = vld [vmem:[%s0 + $0x18] sm:$0xff]
  %v31 = vld [vmem:[%s0 + $0x20] sm:$0xff]
  %v32 = vld [vmem:[%s0 + $0x28] sm:$0xff]
  %v33 = vld [vmem:[%s0 + $0x30] sm:$0xff]
  %v34 = vld [vmem:[%s0 + $0x38] sm:$0xff]
  %v35 = vld [vmem:[%s1] sm:$0xf]
  %v36 = vld [vmem:[%s1 + $0x4] sm:$0xf]
  %v37 = vld [vmem:[%s1 + $0x8] sm:$0xf]
  %v38 = vld [vmem:[%s1 + $0xc] sm:$0xf]
  %v39 = vld [vmem:[%s1 + $0x10] sm:$0xf]
  %v40 = vld [vmem:[%s1 + $0x14] sm:$0xf]
  %v41 = vld [vmem:[%s1 + $0x18] sm:$0xf]
  %v42 = vld [vmem:[%s1 + $0x1c] sm:$0xf]
  %v43 = vld [vmem:[%s1 + $0x20] sm:$0xf]
  %v44 = vld [vmem:[%s1 + $0x24] sm:$0xf]
  %v45 = vld [vmem:[%s1 + $0x28] sm:$0xf]
  %v46 = vld [vmem:[%s1 + $0x2c] sm:$0xf]
  %v47 = vld [vmem:[%s1 + $0x30] sm:$0xf]
  %v48 = vld [vmem:[%s1 + $0x34] sm:$0xf]
  %v49 = vld [vmem:[%s1 + $0x38] sm:$0xf]
  %v50 = vld [vmem:[%s1 + $0x3c] sm:$0xf]
  %v51 = vld [vmem:[%s1 + $0x40] sm:$0xf]
  %v52 = vld [vmem:[%s1 + $0x44] sm:$0xf]
  %v53 = vld [vmem:[%s1 + $0x48] sm:$0xf]
  %v54 = vld [vmem:[%s1 + $0x4c] sm:$0xf]
  %v55 = vld [vmem:[%s1 + $0x50] sm:$0xf]
  %v56 = vld [vmem:[%s1 + $0x54] sm:$0xf]
  %v57 = vld [vmem:[%s1 + $0x58] sm:$0xf]
  %v58 = vld [vmem:[%s1 + $0x5c] sm:$0xf]
  %v59 = vld [vmem:[%s1 + $0x60] sm:$0xf]
  %v60 = vld [vmem:[%s1 + $0x64] sm:$0xf]
  %v61 = vld [vmem:[%s1 + $0x68] sm:$0xf]
  %v62 = vld [vmem:[%s1 + $0x6c] sm:$0xf]
  %v63 = vld [vmem:[%s1 + $0x70] sm:$0xf]
  %v64 = vld [vmem:[%s1 + $0x74] sm:$0xf]
  %v65 = vld [vmem:[%s1 + $0x78] sm:$0xf]
  %v66 = vld [vmem:[%s1 + $0x7c] sm:$0xf]
  %v67 = vld [vmem:[%s2] sm:$0x1]
  %v69 = vlaneseq
  %v70 = vshrl.u32 %v69, 7
  %v71 = vsub.s32 0, %v70
  %v72 = vrot.slane %v67, %v71
  %v82 = vunpack.c.l.b16 %v27
  %v83 = vunpack.c.h.b16 %v27
  %v84 = vunpack.c.l.b16 %v28
  %v85 = vunpack.c.h.b16 %v28
  %v86 = vunpack.c.l.b16 %v29
  %v87 = vunpack.c.h.b16 %v29
  %v88 = vunpack.c.l.b16 %v30
  %v89 = vunpack.c.h.b16 %v30
  %v90 = vunpack.c.l.b16 %v31
  %v91 = vunpack.c.h.b16 %v31
  %v92 = vunpack.c.l.b16 %v32
  %v93 = vunpack.c.h.b16 %v32
  %v94 = vunpack.c.l.b16 %v33
  %v95 = vunpack.c.h.b16 %v33
  %v96 = vunpack.c.l.b16 %v34
  %v97 = vunpack.c.h.b16 %v34
  %v98 = vpack.c.b16 %v84, %v82
  %v99 = vpack.c.b16 %v85, %v83
  %v100 = vpack.c.b16 %v88, %v86
  %v101 = vpack.c.b16 %v89, %v87
  %v102 = vpack.c.b16 %v92, %v90
  %v103 = vpack.c.b16 %v93, %v91
  %v104 = vpack.c.b16 %v96, %v94
  %v105 = vpack.c.b16 %v97, %v95
  %v146 = vunpack.c.l.b16 %v35
  %v147 = vunpack.c.l.b16 %v36
  %v148 = vunpack.c.l.b16 %v37
  %v149 = vunpack.c.l.b16 %v38
  %v150 = vunpack.c.l.b16 %v39
  %v151 = vunpack.c.l.b16 %v40
  %v152 = vunpack.c.l.b16 %v41
  %v153 = vunpack.c.l.b16 %v42
  %v154 = vunpack.c.l.b16 %v43
  %v155 = vunpack.c.l.b16 %v44
  %v156 = vunpack.c.l.b16 %v45
  %v157 = vunpack.c.l.b16 %v46
  %v158 = vunpack.c.l.b16 %v47
  %v159 = vunpack.c.l.b16 %v48
  %v160 = vunpack.c.l.b16 %v49
  %v161 = vunpack.c.l.b16 %v50
  %v162 = vunpack.c.l.b16 %v51
  %v163 = vunpack.c.l.b16 %v52
  %v164 = vunpack.c.l.b16 %v53
  %v165 = vunpack.c.l.b16 %v54
  %v166 = vunpack.c.l.b16 %v55
  %v167 = vunpack.c.l.b16 %v56
  %v168 = vunpack.c.l.b16 %v57
  %v169 = vunpack.c.l.b16 %v58
  %v170 = vunpack.c.l.b16 %v59
  %v171 = vunpack.c.l.b16 %v60
  %v172 = vunpack.c.l.b16 %v61
  %v173 = vunpack.c.l.b16 %v62
  %v174 = vunpack.c.l.b16 %v63
  %v175 = vunpack.c.l.b16 %v64
  %v176 = vunpack.c.l.b16 %v65
  %v177 = vunpack.c.l.b16 %v66
  %v178 = vpack.c.b16 %v147, %v146
  %v179 = vpack.c.b16 %v149, %v148
  %v180 = vpack.c.b16 %v151, %v150
  %v181 = vpack.c.b16 %v153, %v152
  %v182 = vpack.c.b16 %v155, %v154
  %v183 = vpack.c.b16 %v157, %v156
  %v184 = vpack.c.b16 %v159, %v158
  %v185 = vpack.c.b16 %v161, %v160
  %v186 = vpack.c.b16 %v163, %v162
  %v187 = vpack.c.b16 %v165, %v164
  %v188 = vpack.c.b16 %v167, %v166
  %v189 = vpack.c.b16 %v169, %v168
  %v190 = vpack.c.b16 %v171, %v170
  %v191 = vpack.c.b16 %v173, %v172
  %v192 = vpack.c.b16 %v175, %v174
  %v193 = vpack.c.b16 %v177, %v176
  %210 = vmatprep.subr.bf16.mxu0 0
  %211 = vmatpush1.bf16.msra.mxu0 %v185
  %212 = vmatprep.subr.bf16.mxu0 0
  %213 = vmatpush1.bf16.msra.mxu0 %v184
  %214 = vmatprep.subr.bf16.mxu0 0
  %215 = vmatpush1.bf16.msra.mxu0 %v183
  %216 = vmatprep.subr.bf16.mxu0 0
  %217 = vmatpush1.bf16.msra.mxu0 %v182
  %218 = vmatprep.subr.bf16.mxu0 0
  %219 = vmatpush1.bf16.msra.mxu0 %v181
  %220 = vmatprep.subr.bf16.mxu0 0
  %221 = vmatpush1.bf16.msra.mxu0 %v180
  %222 = vmatprep.subr.bf16.mxu0 0
  %223 = vmatpush1.bf16.msra.mxu0 %v179
  %224 = vmatprep.subr.bf16.mxu0 0
  %225 = vmatpush1.bf16.msra.mxu0 %v178
  %226 = vmatprep.subr.bf16.mxu0 0
  %227 = vmatpush2.bf16.msra.mxu0 %v193
  %228 = vmatprep.subr.bf16.mxu0 0
  %229 = vmatpush2.bf16.msra.mxu0 %v192
  %230 = vmatprep.subr.bf16.mxu0 0
  %231 = vmatpush2.bf16.msra.mxu0 %v191
  %232 = vmatprep.subr.bf16.mxu0 0
  %233 = vmatpush2.bf16.msra.mxu0 %v190
  %234 = vmatprep.subr.bf16.mxu0 0
  %235 = vmatpush2.bf16.msra.mxu0 %v189
  %236 = vmatprep.subr.bf16.mxu0 0
  %237 = vmatpush2.bf16.msra.mxu0 %v188
  %238 = vmatprep.subr.bf16.mxu0 0
  %239 = vmatpush2.bf16.msra.mxu0 %v187
  %240 = vmatprep.subr.bf16.mxu0 0
  %241 = vmatpush2.bf16.msra.mxu0 %v186
  %242 = vmatprep.mubr.bf16.mxu0 %v99
  %243 = vmatmul.mubr.bf16.gmra.mxu0 %v98
  %v244 = vpop.f32.mrf.mxu0
  %v245 = vadd.f32 %v72, %v244
  %v246 = vpop.f32.mrf.mxu0
  %v247 = vpop.f32.mrf.mxu0
  %v248 = vadd.f32 %v72, %v247
  %v249 = vpop.f32.mrf.mxu0
  %250 = vmatprep.mubr.bf16.mxu0 %v101
  %251 = vmatmul.mubr.bf16.gmra.mxu0 %v100
  %v252 = vpop.f32.mrf.mxu0
  %v253 = vadd.f32 %v72, %v252
  %v254 = vpop.f32.mrf.mxu0
  %v255 = vpop.f32.mrf.mxu0
  %v256 = vadd.f32 %v72, %v255
  %v257 = vpop.f32.mrf.mxu0
  %258 = vmatprep.mubr.bf16.mxu0 %v103
  %259 = vmatmul.mubr.bf16.gmra.mxu0 %v102
  %v260 = vpop.f32.mrf.mxu0
  %v261 = vadd.f32 %v72, %v260
  %v262 = vpop.f32.mrf.mxu0
  %v263 = vpop.f32.mrf.mxu0
  %v264 = vadd.f32 %v72, %v263
  %v265 = vpop.f32.mrf.mxu0
  %266 = vmatprep.mubr.bf16.mxu0 %v105
  %267 = vmatmul.mubr.bf16.gmra.mxu0 %v104
  %v268 = vpop.f32.mrf.mxu0
  %v269 = vadd.f32 %v72, %v268
  %v270 = vpop.f32.mrf.mxu0
  %v271 = vpop.f32.mrf.mxu0
  %v272 = vadd.f32 %v72, %v271
  %v273 = vpop.f32.mrf.mxu0
  %274 = vdwg.mxu0
  %v275 = vmax.f32 %v245, 0.0
  %v276 = vmax.f32 %v248, 0.0
  %v277 = vmax.f32 %v253, 0.0
  %v278 = vmax.f32 %v256, 0.0
  %v279 = vmax.f32 %v261, 0.0
  %v280 = vmax.f32 %v264, 0.0
  %v281 = vmax.f32 %v269, 0.0
  %v282 = vmax.f32 %v272, 0.0
  %v283 = vpack.c.bf16 %v276, %v275
  %v284 = vpack.c.bf16 %v278, %v277
  %v285 = vpack.c.bf16 %v280, %v279
  %v286 = vpack.c.bf16 %v282, %v281
  %v291 = vcombine.high %v283, %v283
  %v293 = vunpack.c.l.s4 1983009808
  %v294 = vunpack.c.0.s8 %v293
  %v295 = vlaneseq
  %v296 = vshrl.u32 %v295, 7
  %v297 = vsub.s32 %v294, %v296
  %v298 = vrot.slane %v283, %v297
  %v300 = vunpack.c.l.s4 1983009808
  %v301 = vunpack.c.0.s8 %v300
  %v302 = vlaneseq
  %v303 = vshrl.u32 %v302, 7
  %v304 = vsub.s32 %v301, %v303
  %v305 = vrot.slane %v291, %v304
  %v306 = vcombine.high %v298, %v298
  %v307 = vcombine.high %v305, %v305
  %v308 = vcombine.high %v284, %v284
  %v310 = vunpack.c.l.s4 1983009808
  %v311 = vunpack.c.0.s8 %v310
  %v312 = vlaneseq
  %v313 = vshrl.u32 %v312, 7
  %v314 = vsub.s32 %v311, %v313
  %v315 = vrot.slane %v284, %v314
  %v317 = vunpack.c.l.s4 1983009808
  %v318 = vunpack.c.0.s8 %v317
  %v319 = vlaneseq
  %v320 = vshrl.u32 %v319, 7
  %v321 = vsub.s32 %v318, %v320
  %v322 = vrot.slane %v308, %v321
  %v323 = vcombine.high %v315, %v315
  %v324 = vcombine.high %v322, %v322
  %v325 = vcombine.high %v285, %v285
  %v327 = vunpack.c.l.s4 1983009808
  %v328 = vunpack.c.0.s8 %v327
  %v329 = vlaneseq
  %v330 = vshrl.u32 %v329, 7
  %v331 = vsub.s32 %v328, %v330
  %v332 = vrot.slane %v285, %v331
  %v334 = vunpack.c.l.s4 1983009808
  %v335 = vunpack.c.0.s8 %v334
  %v336 = vlaneseq
  %v337 = vshrl.u32 %v336, 7
  %v338 = vsub.s32 %v335, %v337
  %v339 = vrot.slane %v325, %v338
  %v340 = vcombine.high %v332, %v332
  %v341 = vcombine.high %v339, %v339
  %v342 = vcombine.high %v286, %v286
  %v344 = vunpack.c.l.s4 1983009808
  %v345 = vunpack.c.0.s8 %v344
  %v346 = vlaneseq
  %v347 = vshrl.u32 %v346, 7
  %v348 = vsub.s32 %v345, %v347
  %v349 = vrot.slane %v286, %v348
  %v351 = vunpack.c.l.s4 1983009808
  %v352 = vunpack.c.0.s8 %v351
  %v353 = vlaneseq
  %v354 = vshrl.u32 %v353, 7
  %v355 = vsub.s32 %v352, %v354
  %v356 = vrot.slane %v342, %v355
  %v357 = vcombine.high %v349, %v349
  %v358 = vcombine.high %v356, %v356
  %v375 = vld [vmem:[%s3] sm:$0xf]
  %v376 = vld [vmem:[%s3 + $0x4] sm:$0xf]
  %v377 = vld [vmem:[%s3 + $0x8] sm:$0xf]
  %v378 = vld [vmem:[%s3 + $0xc] sm:$0xf]
  %v379 = vld [vmem:[%s3 + $0x10] sm:$0xf]
  %v380 = vld [vmem:[%s3 + $0x14] sm:$0xf]
  %v381 = vld [vmem:[%s3 + $0x18] sm:$0xf]
  %v382 = vld [vmem:[%s3 + $0x1c] sm:$0xf]
  %v383 = vld [vmem:[%s3 + $0x20] sm:$0xf]
  %v384 = vld [vmem:[%s3 + $0x24] sm:$0xf]
  %v385 = vld [vmem:[%s3 + $0x28] sm:$0xf]
  %v386 = vld [vmem:[%s3 + $0x2c] sm:$0xf]
  %v387 = vld [vmem:[%s3 + $0x30] sm:$0xf]
  %v388 = vld [vmem:[%s3 + $0x34] sm:$0xf]
  %v389 = vld [vmem:[%s3 + $0x38] sm:$0xf]
  %v390 = vld [vmem:[%s3 + $0x3c] sm:$0xf]
  %v391 = vld [vmem:[%s3 + $0x40] sm:$0xf]
  %v392 = vld [vmem:[%s3 + $0x44] sm:$0xf]
  %v393 = vld [vmem:[%s3 + $0x48] sm:$0xf]
  %v394 = vld [vmem:[%s3 + $0x4c] sm:$0xf]
  %v395 = vld [vmem:[%s3 + $0x50] sm:$0xf]
  %v396 = vld [vmem:[%s3 + $0x54] sm:$0xf]
  %v397 = vld [vmem:[%s3 + $0x58] sm:$0xf]
  %v398 = vld [vmem:[%s3 + $0x5c] sm:$0xf]
  %v399 = vld [vmem:[%s3 + $0x60] sm:$0xf]
  %v400 = vld [vmem:[%s3 + $0x64] sm:$0xf]
  %v401 = vld [vmem:[%s3 + $0x68] sm:$0xf]
  %v402 = vld [vmem:[%s3 + $0x6c] sm:$0xf]
  %v403 = vld [vmem:[%s3 + $0x70] sm:$0xf]
  %v404 = vld [vmem:[%s3 + $0x74] sm:$0xf]
  %v405 = vld [vmem:[%s3 + $0x78] sm:$0xf]
  %v406 = vld [vmem:[%s3 + $0x7c] sm:$0xf]
  %v407 = vld [vmem:[%s3 + $0x80] sm:$0xf]
  %v408 = vld [vmem:[%s3 + $0x84] sm:$0xf]
  %v409 = vld [vmem:[%s3 + $0x88] sm:$0xf]
  %v410 = vld [vmem:[%s3 + $0x8c] sm:$0xf]
  %v411 = vld [vmem:[%s3 + $0x90] sm:$0xf]
  %v412 = vld [vmem:[%s3 + $0x94] sm:$0xf]
  %v413 = vld [vmem:[%s3 + $0x98] sm:$0xf]
  %v414 = vld [vmem:[%s3 + $0x9c] sm:$0xf]
  %v415 = vld [vmem:[%s3 + $0xa0] sm:$0xf]
  %v416 = vld [vmem:[%s3 + $0xa4] sm:$0xf]
  %v417 = vld [vmem:[%s3 + $0xa8] sm:$0xf]
  %v418 = vld [vmem:[%s3 + $0xac] sm:$0xf]
  %v419 = vld [vmem:[%s3 + $0xb0] sm:$0xf]
  %v420 = vld [vmem:[%s3 + $0xb4] sm:$0xf]
  %v421 = vld [vmem:[%s3 + $0xb8] sm:$0xf]
  %v422 = vld [vmem:[%s3 + $0xbc] sm:$0xf]
  %v423 = vld [vmem:[%s3 + $0xc0] sm:$0xf]
  %v424 = vld [vmem:[%s3 + $0xc4] sm:$0xf]
  %v425 = vld [vmem:[%s3 + $0xc8] sm:$0xf]
  %v426 = vld [vmem:[%s3 + $0xcc] sm:$0xf]
  %v427 = vld [vmem:[%s3 + $0xd0] sm:$0xf]
  %v428 = vld [vmem:[%s3 + $0xd4] sm:$0xf]
  %v429 = vld [vmem:[%s3 + $0xd8] sm:$0xf]
  %v430 = vld [vmem:[%s3 + $0xdc] sm:$0xf]
  %v431 = vld [vmem:[%s3 + $0xe0] sm:$0xf]
  %v432 = vld [vmem:[%s3 + $0xe4] sm:$0xf]
  %v433 = vld [vmem:[%s3 + $0xe8] sm:$0xf]
  %v434 = vld [vmem:[%s3 + $0xec] sm:$0xf]
  %v435 = vld [vmem:[%s3 + $0xf0] sm:$0xf]
  %v436 = vld [vmem:[%s3 + $0xf4] sm:$0xf]
  %v437 = vld [vmem:[%s3 + $0xf8] sm:$0xf]
  %v438 = vld [vmem:[%s3 + $0xfc] sm:$0xf]
  %v439 = vld [vmem:[%s3 + $0x100] sm:$0xf]
  %v440 = vld [vmem:[%s3 + $0x104] sm:$0xf]
  %v441 = vld [vmem:[%s3 + $0x108] sm:$0xf]
  %v442 = vld [vmem:[%s3 + $0x10c] sm:$0xf]
  %v443 = vld [vmem:[%s3 + $0x110] sm:$0xf]
  %v444 = vld [vmem:[%s3 + $0x114] sm:$0xf]
  %v445 = vld [vmem:[%s3 + $0x118] sm:$0xf]
  %v446 = vld [vmem:[%s3 + $0x11c] sm:$0xf]
  %v447 = vld [vmem:[%s3 + $0x120] sm:$0xf]
  %v448 = vld [vmem:[%s3 + $0x124] sm:$0xf]
  %v449 = vld [vmem:[%s3 + $0x128] sm:$0xf]
  %v450 = vld [vmem:[%s3 + $0x12c] sm:$0xf]
  %v451 = vld [vmem:[%s3 + $0x130] sm:$0xf]
  %v452 = vld [vmem:[%s3 + $0x134] sm:$0xf]
  %v453 = vld [vmem:[%s3 + $0x138] sm:$0xf]
  %v454 = vld [vmem:[%s3 + $0x13c] sm:$0xf]
  %v455 = vld [vmem:[%s3 + $0x140] sm:$0xf]
  %v456 = vld [vmem:[%s3 + $0x144] sm:$0xf]
  %v457 = vld [vmem:[%s3 + $0x148] sm:$0xf]
  %v458 = vld [vmem:[%s3 + $0x14c] sm:$0xf]
  %v459 = vld [vmem:[%s3 + $0x150] sm:$0xf]
  %v460 = vld [vmem:[%s3 + $0x154] sm:$0xf]
  %v461 = vld [vmem:[%s3 + $0x158] sm:$0xf]
  %v462 = vld [vmem:[%s3 + $0x15c] sm:$0xf]
  %v463 = vld [vmem:[%s3 + $0x160] sm:$0xf]
  %v464 = vld [vmem:[%s3 + $0x164] sm:$0xf]
  %v465 = vld [vmem:[%s3 + $0x168] sm:$0xf]
  %v466 = vld [vmem:[%s3 + $0x16c] sm:$0xf]
  %v467 = vld [vmem:[%s3 + $0x170] sm:$0xf]
  %v468 = vld [vmem:[%s3 + $0x174] sm:$0xf]
  %v469 = vld [vmem:[%s3 + $0x178] sm:$0xf]
  %v470 = vld [vmem:[%s3 + $0x17c] sm:$0xf]
  %v471 = vld [vmem:[%s3 + $0x180] sm:$0xf]
  %v472 = vld [vmem:[%s3 + $0x184] sm:$0xf]
  %v473 = vld [vmem:[%s3 + $0x188] sm:$0xf]
  %v474 = vld [vmem:[%s3 + $0x18c] sm:$0xf]
  %v475 = vld [vmem:[%s3 + $0x190] sm:$0xf]
  %v476 = vld [vmem:[%s3 + $0x194] sm:$0xf]
  %v477 = vld [vmem:[%s3 + $0x198] sm:$0xf]
  %v478 = vld [vmem:[%s3 + $0x19c] sm:$0xf]
  %v479 = vld [vmem:[%s3 + $0x1a0] sm:$0xf]
  %v480 = vld [vmem:[%s3 + $0x1a4] sm:$0xf]
  %v481 = vld [vmem:[%s3 + $0x1a8] sm:$0xf]
  %v482 = vld [vmem:[%s3 + $0x1ac] sm:$0xf]
  %v483 = vld [vmem:[%s3 + $0x1b0] sm:$0xf]
  %v484 = vld [vmem:[%s3 + $0x1b4] sm:$0xf]
  %v485 = vld [vmem:[%s3 + $0x1b8] sm:$0xf]
  %v486 = vld [vmem:[%s3 + $0x1bc] sm:$0xf]
  %v487 = vld [vmem:[%s3 + $0x1c0] sm:$0xf]
  %v488 = vld [vmem:[%s3 + $0x1c4] sm:$0xf]
  %v489 = vld [vmem:[%s3 + $0x1c8] sm:$0xf]
  %v490 = vld [vmem:[%s3 + $0x1cc] sm:$0xf]
  %v491 = vld [vmem:[%s3 + $0x1d0] sm:$0xf]
  %v492 = vld [vmem:[%s3 + $0x1d4] sm:$0xf]
  %v493 = vld [vmem:[%s3 + $0x1d8] sm:$0xf]
  %v494 = vld [vmem:[%s3 + $0x1dc] sm:$0xf]
  %v495 = vld [vmem:[%s3 + $0x1e0] sm:$0xf]
  %v496 = vld [vmem:[%s3 + $0x1e4] sm:$0xf]
  %v497 = vld [vmem:[%s3 + $0x1e8] sm:$0xf]
  %v498 = vld [vmem:[%s3 + $0x1ec] sm:$0xf]
  %v499 = vld [vmem:[%s3 + $0x1f0] sm:$0xf]
  %v500 = vld [vmem:[%s3 + $0x1f4] sm:$0xf]
  %v501 = vld [vmem:[%s3 + $0x1f8] sm:$0xf]
  %v502 = vld [vmem:[%s3 + $0x1fc] sm:$0xf]
  %v503 = vld [vmem:[%s3 + $0x200] sm:$0xf]
  %v504 = vld [vmem:[%s3 + $0x204] sm:$0xf]
  %v505 = vld [vmem:[%s3 + $0x208] sm:$0xf]
  %v506 = vld [vmem:[%s3 + $0x20c] sm:$0xf]
  %v507 = vld [vmem:[%s3 + $0x210] sm:$0xf]
  %v508 = vld [vmem:[%s3 + $0x214] sm:$0xf]
  %v509 = vld [vmem:[%s3 + $0x218] sm:$0xf]
  %v510 = vld [vmem:[%s3 + $0x21c] sm:$0xf]
  %v511 = vld [vmem:[%s3 + $0x220] sm:$0xf]
  %v512 = vld [vmem:[%s3 + $0x224] sm:$0xf]
  %v513 = vld [vmem:[%s3 + $0x228] sm:$0xf]
  %v514 = vld [vmem:[%s3 + $0x22c] sm:$0xf]
  %v515 = vld [vmem:[%s3 + $0x230] sm:$0xf]
  %v516 = vld [vmem:[%s3 + $0x234] sm:$0xf]
  %v517 = vld [vmem:[%s3 + $0x238] sm:$0xf]
  %v518 = vld [vmem:[%s3 + $0x23c] sm:$0xf]
  %v519 = vld [vmem:[%s3 + $0x240] sm:$0xf]
  %v520 = vld [vmem:[%s3 + $0x244] sm:$0xf]
  %v521 = vld [vmem:[%s3 + $0x248] sm:$0xf]
  %v522 = vld [vmem:[%s3 + $0x24c] sm:$0xf]
  %v523 = vld [vmem:[%s3 + $0x250] sm:$0xf]
  %v524 = vld [vmem:[%s3 + $0x254] sm:$0xf]
  %v525 = vld [vmem:[%s3 + $0x258] sm:$0xf]
  %v526 = vld [vmem:[%s3 + $0x25c] sm:$0xf]
  %v527 = vld [vmem:[%s3 + $0x260] sm:$0xf]
  %v528 = vld [vmem:[%s3 + $0x264] sm:$0xf]
  %v529 = vld [vmem:[%s3 + $0x268] sm:$0xf]
  %v530 = vld [vmem:[%s3 + $0x26c] sm:$0xf]
  %v531 = vld [vmem:[%s3 + $0x270] sm:$0xf]
  %v532 = vld [vmem:[%s3 + $0x274] sm:$0xf]
  %v533 = vld [vmem:[%s3 + $0x278] sm:$0xf]
  %v534 = vld [vmem:[%s3 + $0x27c] sm:$0xf]
  %v535 = vld [vmem:[%s3 + $0x280] sm:$0xf]
  %v536 = vld [vmem:[%s3 + $0x284] sm:$0xf]
  %v537 = vld [vmem:[%s3 + $0x288] sm:$0xf]
  %v538 = vld [vmem:[%s3 + $0x28c] sm:$0xf]
  %v539 = vld [vmem:[%s3 + $0x290] sm:$0xf]
  %v540 = vld [vmem:[%s3 + $0x294] sm:$0xf]
  %v541 = vld [vmem:[%s3 + $0x298] sm:$0xf]
  %v542 = vld [vmem:[%s3 + $0x29c] sm:$0xf]
  %v543 = vld [vmem:[%s3 + $0x2a0] sm:$0xf]
  %v544 = vld [vmem:[%s3 + $0x2a4] sm:$0xf]
  %v545 = vld [vmem:[%s3 + $0x2a8] sm:$0xf]
  %v546 = vld [vmem:[%s3 + $0x2ac] sm:$0xf]
  %v547 = vld [vmem:[%s3 + $0x2b0] sm:$0xf]
  %v548 = vld [vmem:[%s3 + $0x2b4] sm:$0xf]
  %v549 = vld [vmem:[%s3 + $0x2b8] sm:$0xf]
  %v550 = vld [vmem:[%s3 + $0x2bc] sm:$0xf]
  %v551 = vld [vmem:[%s3 + $0x2c0] sm:$0xf]
  %v552 = vld [vmem:[%s3 + $0x2c4] sm:$0xf]
  %v553 = vld [vmem:[%s3 + $0x2c8] sm:$0xf]
  %v554 = vld [vmem:[%s3 + $0x2cc] sm:$0xf]
  %v555 = vld [vmem:[%s3 + $0x2d0] sm:$0xf]
  %v556 = vld [vmem:[%s3 + $0x2d4] sm:$0xf]
  %v557 = vld [vmem:[%s3 + $0x2d8] sm:$0xf]
  %v558 = vld [vmem:[%s3 + $0x2dc] sm:$0xf]
  %v559 = vld [vmem:[%s3 + $0x2e0] sm:$0xf]
  %v560 = vld [vmem:[%s3 + $0x2e4] sm:$0xf]
  %v561 = vld [vmem:[%s3 + $0x2e8] sm:$0xf]
  %v562 = vld [vmem:[%s3 + $0x2ec] sm:$0xf]
  %v563 = vld [vmem:[%s3 + $0x2f0] sm:$0xf]
  %v564 = vld [vmem:[%s3 + $0x2f4] sm:$0xf]
  %v565 = vld [vmem:[%s3 + $0x2f8] sm:$0xf]
  %v566 = vld [vmem:[%s3 + $0x2fc] sm:$0xf]
  %v567 = vld [vmem:[%s3 + $0x300] sm:$0xf]
  %v568 = vld [vmem:[%s3 + $0x304] sm:$0xf]
  %v569 = vld [vmem:[%s3 + $0x308] sm:$0xf]
  %v570 = vld [vmem:[%s3 + $0x30c] sm:$0xf]
  %v571 = vld [vmem:[%s3 + $0x310] sm:$0xf]
  %v572 = vld [vmem:[%s3 + $0x314] sm:$0xf]
  %v573 = vld [vmem:[%s3 + $0x318] sm:$0xf]
  %v574 = vld [vmem:[%s3 + $0x31c] sm:$0xf]
  %v575 = vld [vmem:[%s3 + $0x320] sm:$0xf]
  %v576 = vld [vmem:[%s3 + $0x324] sm:$0xf]
  %v577 = vld [vmem:[%s3 + $0x328] sm:$0xf]
  %v578 = vld [vmem:[%s3 + $0x32c] sm:$0xf]
  %v579 = vld [vmem:[%s3 + $0x330] sm:$0xf]
  %v580 = vld [vmem:[%s3 + $0x334] sm:$0xf]
  %v581 = vld [vmem:[%s3 + $0x338] sm:$0xf]
  %v582 = vld [vmem:[%s3 + $0x33c] sm:$0xf]
  %v583 = vld [vmem:[%s3 + $0x340] sm:$0xf]
  %v584 = vld [vmem:[%s3 + $0x344] sm:$0xf]
  %v585 = vld [vmem:[%s3 + $0x348] sm:$0xf]
  %v586 = vld [vmem:[%s3 + $0x34c] sm:$0xf]
  %v587 = vld [vmem:[%s3 + $0x350] sm:$0xf]
  %v588 = vld [vmem:[%s3 + $0x354] sm:$0xf]
  %v589 = vld [vmem:[%s3 + $0x358] sm:$0xf]
  %v590 = vld [vmem:[%s3 + $0x35c] sm:$0xf]
  %v591 = vld [vmem:[%s3 + $0x360] sm:$0xf]
  %v592 = vld [vmem:[%s3 + $0x364] sm:$0xf]
  %v593 = vld [vmem:[%s3 + $0x368] sm:$0xf]
  %v594 = vld [vmem:[%s3 + $0x36c] sm:$0xf]
  %v595 = vld [vmem:[%s3 + $0x370] sm:$0xf]
  %v596 = vld [vmem:[%s3 + $0x374] sm:$0xf]
  %v597 = vld [vmem:[%s3 + $0x378] sm:$0xf]
  %v598 = vld [vmem:[%s3 + $0x37c] sm:$0xf]
  %v599 = vld [vmem:[%s3 + $0x380] sm:$0xf]
  %v600 = vld [vmem:[%s3 + $0x384] sm:$0xf]
  %v601 = vld [vmem:[%s3 + $0x388] sm:$0xf]
  %v602 = vld [vmem:[%s3 + $0x38c] sm:$0xf]
  %v603 = vld [vmem:[%s3 + $0x390] sm:$0xf]
  %v604 = vld [vmem:[%s3 + $0x394] sm:$0xf]
  %v605 = vld [vmem:[%s3 + $0x398] sm:$0xf]
  %v606 = vld [vmem:[%s3 + $0x39c] sm:$0xf]
  %v607 = vld [vmem:[%s3 + $0x3a0] sm:$0xf]
  %v608 = vld [vmem:[%s3 + $0x3a4] sm:$0xf]
  %v609 = vld [vmem:[%s3 + $0x3a8] sm:$0xf]
  %v610 = vld [vmem:[%s3 + $0x3ac] sm:$0xf]
  %v611 = vld [vmem:[%s3 + $0x3b0] sm:$0xf]
  %v612 = vld [vmem:[%s3 + $0x3b4] sm:$0xf]
  %v613 = vld [vmem:[%s3 + $0x3b8] sm:$0xf]
  %v614 = vld [vmem:[%s3 + $0x3bc] sm:$0xf]
  %v615 = vld [vmem:[%s3 + $0x3c0] sm:$0xf]
  %v616 = vld [vmem:[%s3 + $0x3c4] sm:$0xf]
  %v617 = vld [vmem:[%s3 + $0x3c8] sm:$0xf]
  %v618 = vld [vmem:[%s3 + $0x3cc] sm:$0xf]
  %v619 = vld [vmem:[%s3 + $0x3d0] sm:$0xf]
  %v620 = vld [vmem:[%s3 + $0x3d4] sm:$0xf]
  %v621 = vld [vmem:[%s3 + $0x3d8] sm:$0xf]
  %v622 = vld [vmem:[%s3 + $0x3dc] sm:$0xf]
  %v623 = vld [vmem:[%s3 + $0x3e0] sm:$0xf]
  %v624 = vld [vmem:[%s3 + $0x3e4] sm:$0xf]
  %v625 = vld [vmem:[%s3 + $0x3e8] sm:$0xf]
  %v626 = vld [vmem:[%s3 + $0x3ec] sm:$0xf]
  %v627 = vld [vmem:[%s3 + $0x3f0] sm:$0xf]
  %v628 = vld [vmem:[%s3 + $0x3f4] sm:$0xf]
  %v629 = vld [vmem:[%s3 + $0x3f8] sm:$0xf]
  %v630 = vld [vmem:[%s3 + $0x3fc] sm:$0xf]
  %v647 = vunpack.c.l.b16 %v375
  %v648 = vunpack.c.l.b16 %v376
  %v649 = vunpack.c.l.b16 %v377
  %v650 = vunpack.c.l.b16 %v378
  %v651 = vunpack.c.l.b16 %v379
  %v652 = vunpack.c.l.b16 %v380
  %v653 = vunpack.c.l.b16 %v381
  %v654 = vunpack.c.l.b16 %v382
  %v655 = vunpack.c.l.b16 %v383
  %v656 = vunpack.c.l.b16 %v384
  %v657 = vunpack.c.l.b16 %v385
  %v658 = vunpack.c.l.b16 %v386
  %v659 = vunpack.c.l.b16 %v387
  %v660 = vunpack.c.l.b16 %v388
  %v661 = vunpack.c.l.b16 %v389
  %v662 = vunpack.c.l.b16 %v390
  %v663 = vpack.c.b16 %v648, %v647
  %v664 = vpack.c.b16 %v650, %v649
  %v665 = vpack.c.b16 %v652, %v651
  %v666 = vpack.c.b16 %v654, %v653
  %v667 = vpack.c.b16 %v656, %v655
  %v668 = vpack.c.b16 %v658, %v657
  %v669 = vpack.c.b16 %v660, %v659
  %v670 = vpack.c.b16 %v662, %v661
  %679 = vmatprep.subr.bf16.mxu0 0
  %680 = vmatpush1.bf16.msra.mxu0 %v670
  %681 = vmatprep.subr.bf16.mxu0 0
  %682 = vmatpush1.bf16.msra.mxu0 %v669
  %683 = vmatprep.subr.bf16.mxu0 0
  %684 = vmatpush1.bf16.msra.mxu0 %v668
  %685 = vmatprep.subr.bf16.mxu0 0
  %686 = vmatpush1.bf16.msra.mxu0 %v667
  %687 = vmatprep.subr.bf16.mxu0 0
  %688 = vmatpush1.bf16.msra.mxu0 %v666
  %689 = vmatprep.subr.bf16.mxu0 0
  %690 = vmatpush1.bf16.msra.mxu0 %v665
  %691 = vmatprep.subr.bf16.mxu0 0
  %692 = vmatpush1.bf16.msra.mxu0 %v664
  %693 = vmatprep.subr.bf16.mxu0 0
  %694 = vmatpush1.bf16.msra.mxu0 %v663
  %695 = vmatprep.subr.bf16.mxu0 0
  %696 = vmatpush2.bf16.msra.mxu0 0
  %697 = vmatprep.subr.bf16.mxu0 0
  %698 = vmatpush2.bf16.msra.mxu0 0
  %699 = vmatprep.subr.bf16.mxu0 0
  %700 = vmatpush2.bf16.msra.mxu0 0
  %701 = vmatprep.subr.bf16.mxu0 0
  %702 = vmatpush2.bf16.msra.mxu0 0
  %703 = vmatprep.subr.bf16.mxu0 0
  %704 = vmatpush2.bf16.msra.mxu0 0
  %705 = vmatprep.subr.bf16.mxu0 0
  %706 = vmatpush2.bf16.msra.mxu0 0
  %707 = vmatprep.subr.bf16.mxu0 0
  %708 = vmatpush2.bf16.msra.mxu0 0
  %709 = vmatprep.subr.bf16.mxu0 0
  %710 = vmatpush2.bf16.msra.mxu0 0
  %711 = vmatprep.mubr.bf16.mxu0 0
  %712 = vmatmul.mubr.bf16.gmra.mxu0 %v298
  %v713 = vpop.f32.mrf.mxu0
  %v714 = vadd.f32 0.0, %v713
  %v715 = vpop.f32.mrf.mxu0
  %v716 = vpop.f32.mrf.mxu0
  %v717 = vpop.f32.mrf.mxu0
  %718 = vdwg.mxu0
  %v735 = vunpack.c.l.b16 %v391
  %v736 = vunpack.c.l.b16 %v392
  %v737 = vunpack.c.l.b16 %v393
  %v738 = vunpack.c.l.b16 %v394
  %v739 = vunpack.c.l.b16 %v395
  %v740 = vunpack.c.l.b16 %v396
  %v741 = vunpack.c.l.b16 %v397
  %v742 = vunpack.c.l.b16 %v398
  %v743 = vunpack.c.l.b16 %v399
  %v744 = vunpack.c.l.b16 %v400
  %v745 = vunpack.c.l.b16 %v401
  %v746 = vunpack.c.l.b16 %v402
  %v747 = vunpack.c.l.b16 %v403
  %v748 = vunpack.c.l.b16 %v404
  %v749 = vunpack.c.l.b16 %v405
  %v750 = vunpack.c.l.b16 %v406
  %v751 = vpack.c.b16 %v736, %v735
  %v752 = vpack.c.b16 %v738, %v737
  %v753 = vpack.c.b16 %v740, %v739
  %v754 = vpack.c.b16 %v742, %v741
  %v755 = vpack.c.b16 %v744, %v743
  %v756 = vpack.c.b16 %v746, %v745
  %v757 = vpack.c.b16 %v748, %v747
  %v758 = vpack.c.b16 %v750, %v749
  %767 = vmatprep.subr.bf16.mxu0 0
  %768 = vmatpush1.bf16.msra.mxu0 %v758
  %769 = vmatprep.subr.bf16.mxu0 0
  %770 = vmatpush1.bf16.msra.mxu0 %v757
  %771 = vmatprep.subr.bf16.mxu0 0
  %772 = vmatpush1.bf16.msra.mxu0 %v756
  %773 = vmatprep.subr.bf16.mxu0 0
  %774 = vmatpush1.bf16.msra.mxu0 %v755
  %775 = vmatprep.subr.bf16.mxu0 0
  %776 = vmatpush1.bf16.msra.mxu0 %v754
  %777 = vmatprep.subr.bf16.mxu0 0
  %778 = vmatpush1.bf16.msra.mxu0 %v753
  %779 = vmatprep.subr.bf16.mxu0 0
  %780 = vmatpush1.bf16.msra.mxu0 %v752
  %781 = vmatprep.subr.bf16.mxu0 0
  %782 = vmatpush1.bf16.msra.mxu0 %v751
  %783 = vmatprep.subr.bf16.mxu0 0
  %784 = vmatpush2.bf16.msra.mxu0 0
  %785 = vmatprep.subr.bf16.mxu0 0
  %786 = vmatpush2.bf16.msra.mxu0 0
  %787 = vmatprep.subr.bf16.mxu0 0
  %788 = vmatpush2.bf16.msra.mxu0 0
  %789 = vmatprep.subr.bf16.mxu0 0
  %790 = vmatpush2.bf16.msra.mxu0 0
  %791 = vmatprep.subr.bf16.mxu0 0
  %792 = vmatpush2.bf16.msra.mxu0 0
  %793 = vmatprep.subr.bf16.mxu0 0
  %794 = vmatpush2.bf16.msra.mxu0 0
  %795 = vmatprep.subr.bf16.mxu0 0
  %796 = vmatpush2.bf16.msra.mxu0 0
  %797 = vmatprep.subr.bf16.mxu0 0
  %798 = vmatpush2.bf16.msra.mxu0 0
  %799 = vmatprep.mubr.bf16.mxu0 0
  %800 = vmatmul.mubr.bf16.gmra.mxu0 %v306
  %v801 = vpop.f32.mrf.mxu0
  %v802 = vadd.f32 0.0, %v801
  %v803 = vpop.f32.mrf.mxu0
  %v804 = vpop.f32.mrf.mxu0
  %v805 = vpop.f32.mrf.mxu0
  %806 = vdwg.mxu0
  %v823 = vunpack.c.l.b16 %v407
  %v824 = vunpack.c.l.b16 %v408
  %v825 = vunpack.c.l.b16 %v409
  %v826 = vunpack.c.l.b16 %v410
  %v827 = vunpack.c.l.b16 %v411
  %v828 = vunpack.c.l.b16 %v412
  %v829 = vunpack.c.l.b16 %v413
  %v830 = vunpack.c.l.b16 %v414
  %v831 = vunpack.c.l.b16 %v415
  %v832 = vunpack.c.l.b16 %v416
  %v833 = vunpack.c.l.b16 %v417
  %v834 = vunpack.c.l.b16 %v418
  %v835 = vunpack.c.l.b16 %v419
  %v836 = vunpack.c.l.b16 %v420
  %v837 = vunpack.c.l.b16 %v421
  %v838 = vunpack.c.l.b16 %v422
  %v839 = vpack.c.b16 %v824, %v823
  %v840 = vpack.c.b16 %v826, %v825
  %v841 = vpack.c.b16 %v828, %v827
  %v842 = vpack.c.b16 %v830, %v829
  %v843 = vpack.c.b16 %v832, %v831
  %v844 = vpack.c.b16 %v834, %v833
  %v845 = vpack.c.b16 %v836, %v835
  %v846 = vpack.c.b16 %v838, %v837
  %855 = vmatprep.subr.bf16.mxu0 0
  %856 = vmatpush1.bf16.msra.mxu0 %v846
  %857 = vmatprep.subr.bf16.mxu0 0
  %858 = vmatpush1.bf16.msra.mxu0 %v845
  %859 = vmatprep.subr.bf16.mxu0 0
  %860 = vmatpush1.bf16.msra.mxu0 %v844
  %861 = vmatprep.subr.bf16.mxu0 0
  %862 = vmatpush1.bf16.msra.mxu0 %v843
  %863 = vmatprep.subr.bf16.mxu0 0
  %864 = vmatpush1.bf16.msra.mxu0 %v842
  %865 = vmatprep.subr.bf16.mxu0 0
  %866 = vmatpush1.bf16.msra.mxu0 %v841
  %867 = vmatprep.subr.bf16.mxu0 0
  %868 = vmatpush1.bf16.msra.mxu0 %v840
  %869 = vmatprep.subr.bf16.mxu0 0
  %870 = vmatpush1.bf16.msra.mxu0 %v839
  %871 = vmatprep.subr.bf16.mxu0 0
  %872 = vmatpush2.bf16.msra.mxu0 0
  %873 = vmatprep.subr.bf16.mxu0 0
  %874 = vmatpush2.bf16.msra.mxu0 0
  %875 = vmatprep.subr.bf16.mxu0 0
  %876 = vmatpush2.bf16.msra.mxu0 0
  %877 = vmatprep.subr.bf16.mxu0 0
  %878 = vmatpush2.bf16.msra.mxu0 0
  %879 = vmatprep.subr.bf16.mxu0 0
  %880 = vmatpush2.bf16.msra.mxu0 0
  %881 = vmatprep.subr.bf16.mxu0 0
  %882 = vmatpush2.bf16.msra.mxu0 0
  %883 = vmatprep.subr.bf16.mxu0 0
  %884 = vmatpush2.bf16.msra.mxu0 0
  %885 = vmatprep.subr.bf16.mxu0 0
  %886 = vmatpush2.bf16.msra.mxu0 0
  %887 = vmatprep.mubr.bf16.mxu0 0
  %888 = vmatmul.mubr.bf16.gmra.mxu0 %v305
  %v889 = vpop.f32.mrf.mxu0
  %v890 = vadd.f32 0.0, %v889
  %v891 = vpop.f32.mrf.mxu0
  %v892 = vpop.f32.mrf.mxu0
  %v893 = vpop.f32.mrf.mxu0
  %894 = vdwg.mxu0
  %v911 = vunpack.c.l.b16 %v423
  %v912 = vunpack.c.l.b16 %v424
  %v913 = vunpack.c.l.b16 %v425
  %v914 = vunpack.c.l.b16 %v426
  %v915 = vunpack.c.l.b16 %v427
  %v916 = vunpack.c.l.b16 %v428
  %v917 = vunpack.c.l.b16 %v429
  %v918 = vunpack.c.l.b16 %v430
  %v919 = vunpack.c.l.b16 %v431
  %v920 = vunpack.c.l.b16 %v432
  %v921 = vunpack.c.l.b16 %v433
  %v922 = vunpack.c.l.b16 %v434
  %v923 = vunpack.c.l.b16 %v435
  %v924 = vunpack.c.l.b16 %v436
  %v925 = vunpack.c.l.b16 %v437
  %v926 = vunpack.c.l.b16 %v438
  %v927 = vpack.c.b16 %v912, %v911
  %v928 = vpack.c.b16 %v914, %v913
  %v929 = vpack.c.b16 %v916, %v915
  %v930 = vpack.c.b16 %v918, %v917
  %v931 = vpack.c.b16 %v920, %v919
  %v932 = vpack.c.b16 %v922, %v921
  %v933 = vpack.c.b16 %v924, %v923
  %v934 = vpack.c.b16 %v926, %v925
  %943 = vmatprep.subr.bf16.mxu0 0
  %944 = vmatpush1.bf16.msra.mxu0 %v934
  %945 = vmatprep.subr.bf16.mxu0 0
  %946 = vmatpush1.bf16.msra.mxu0 %v933
  %947 = vmatprep.subr.bf16.mxu0 0
  %948 = vmatpush1.bf16.msra.mxu0 %v932
  %949 = vmatprep.subr.bf16.mxu0 0
  %950 = vmatpush1.bf16.msra.mxu0 %v931
  %951 = vmatprep.subr.bf16.mxu0 0
  %952 = vmatpush1.bf16.msra.mxu0 %v930
  %953 = vmatprep.subr.bf16.mxu0 0
  %954 = vmatpush1.bf16.msra.mxu0 %v929
  %955 = vmatprep.subr.bf16.mxu0 0
  %956 = vmatpush1.bf16.msra.mxu0 %v928
  %957 = vmatprep.subr.bf16.mxu0 0
  %958 = vmatpush1.bf16.msra.mxu0 %v927
  %959 = vmatprep.subr.bf16.mxu0 0
  %960 = vmatpush2.bf16.msra.mxu0 0
  %961 = vmatprep.subr.bf16.mxu0 0
  %962 = vmatpush2.bf16.msra.mxu0 0
  %963 = vmatprep.subr.bf16.mxu0 0
  %964 = vmatpush2.bf16.msra.mxu0 0
  %965 = vmatprep.subr.bf16.mxu0 0
  %966 = vmatpush2.bf16.msra.mxu0 0
  %967 = vmatprep.subr.bf16.mxu0 0
  %968 = vmatpush2.bf16.msra.mxu0 0
  %969 = vmatprep.subr.bf16.mxu0 0
  %970 = vmatpush2.bf16.msra.mxu0 0
  %971 = vmatprep.subr.bf16.mxu0 0
  %972 = vmatpush2.bf16.msra.mxu0 0
  %973 = vmatprep.subr.bf16.mxu0 0
  %974 = vmatpush2.bf16.msra.mxu0 0
  %975 = vmatprep.mubr.bf16.mxu0 0
  %976 = vmatmul.mubr.bf16.gmra.mxu0 %v307
  %v977 = vpop.f32.mrf.mxu0
  %v978 = vadd.f32 0.0, %v977
  %v979 = vpop.f32.mrf.mxu0
  %v980 = vpop.f32.mrf.mxu0
  %v981 = vpop.f32.mrf.mxu0
  %982 = vdwg.mxu0
  %v999 = vunpack.c.l.b16 %v439
  %v1000 = vunpack.c.l.b16 %v440
  %v1001 = vunpack.c.l.b16 %v441
  %v1002 = vunpack.c.l.b16 %v442
  %v1003 = vunpack.c.l.b16 %v443
  %v1004 = vunpack.c.l.b16 %v444
  %v1005 = vunpack.c.l.b16 %v445
  %v1006 = vunpack.c.l.b16 %v446
  %v1007 = vunpack.c.l.b16 %v447
  %v1008 = vunpack.c.l.b16 %v448
  %v1009 = vunpack.c.l.b16 %v449
  %v1010 = vunpack.c.l.b16 %v450
  %v1011 = vunpack.c.l.b16 %v451
  %v1012 = vunpack.c.l.b16 %v452
  %v1013 = vunpack.c.l.b16 %v453
  %v1014 = vunpack.c.l.b16 %v454
  %v1015 = vpack.c.b16 %v1000, %v999
  %v1016 = vpack.c.b16 %v1002, %v1001
  %v1017 = vpack.c.b16 %v1004, %v1003
  %v1018 = vpack.c.b16 %v1006, %v1005
  %v1019 = vpack.c.b16 %v1008, %v1007
  %v1020 = vpack.c.b16 %v1010, %v1009
  %v1021 = vpack.c.b16 %v1012, %v1011
  %v1022 = vpack.c.b16 %v1014, %v1013
  %1031 = vmatprep.subr.bf16.mxu0 0
  %1032 = vmatpush1.bf16.msra.mxu0 %v1022
  %1033 = vmatprep.subr.bf16.mxu0 0
  %1034 = vmatpush1.bf16.msra.mxu0 %v1021
  %1035 = vmatprep.subr.bf16.mxu0 0
  %1036 = vmatpush1.bf16.msra.mxu0 %v1020
  %1037 = vmatprep.subr.bf16.mxu0 0
  %1038 = vmatpush1.bf16.msra.mxu0 %v1019
  %1039 = vmatprep.subr.bf16.mxu0 0
  %1040 = vmatpush1.bf16.msra.mxu0 %v1018
  %1041 = vmatprep.subr.bf16.mxu0 0
  %1042 = vmatpush1.bf16.msra.mxu0 %v1017
  %1043 = vmatprep.subr.bf16.mxu0 0
  %1044 = vmatpush1.bf16.msra.mxu0 %v1016
  %1045 = vmatprep.subr.bf16.mxu0 0
  %1046 = vmatpush1.bf16.msra.mxu0 %v1015
  %1047 = vmatprep.subr.bf16.mxu0 0
  %1048 = vmatpush2.bf16.msra.mxu0 0
  %1049 = vmatprep.subr.bf16.mxu0 0
  %1050 = vmatpush2.bf16.msra.mxu0 0
  %1051 = vmatprep.subr.bf16.mxu0 0
  %1052 = vmatpush2.bf16.msra.mxu0 0
  %1053 = vmatprep.subr.bf16.mxu0 0
  %1054 = vmatpush2.bf16.msra.mxu0 0
  %1055 = vmatprep.subr.bf16.mxu0 0
  %1056 = vmatpush2.bf16.msra.mxu0 0
  %1057 = vmatprep.subr.bf16.mxu0 0
  %1058 = vmatpush2.bf16.msra.mxu0 0
  %1059 = vmatprep.subr.bf16.mxu0 0
  %1060 = vmatpush2.bf16.msra.mxu0 0
  %1061 = vmatprep.subr.bf16.mxu0 0
  %1062 = vmatpush2.bf16.msra.mxu0 0
  %1063 = vmatprep.mubr.bf16.mxu0 0
  %1064 = vmatmul.mubr.bf16.gmra.mxu0 %v315
  %v1065 = vpop.f32.mrf.mxu0
  %v1066 = vadd.f32 0.0, %v1065
  %v1067 = vpop.f32.mrf.mxu0
  %v1068 = vpop.f32.mrf.mxu0
  %v1069 = vpop.f32.mrf.mxu0
  %1070 = vdwg.mxu0
  %v1087 = vunpack.c.l.b16 %v455
  %v1088 = vunpack.c.l.b16 %v456
  %v1089 = vunpack.c.l.b16 %v457
  %v1090 = vunpack.c.l.b16 %v458
  %v1091 = vunpack.c.l.b16 %v459
  %v1092 = vunpack.c.l.b16 %v460
  %v1093 = vunpack.c.l.b16 %v461
  %v1094 = vunpack.c.l.b16 %v462
  %v1095 = vunpack.c.l.b16 %v463
  %v1096 = vunpack.c.l.b16 %v464
  %v1097 = vunpack.c.l.b16 %v465
  %v1098 = vunpack.c.l.b16 %v466
  %v1099 = vunpack.c.l.b16 %v467
  %v1100 = vunpack.c.l.b16 %v468
  %v1101 = vunpack.c.l.b16 %v469
  %v1102 = vunpack.c.l.b16 %v470
  %v1103 = vpack.c.b16 %v1088, %v1087
  %v1104 = vpack.c.b16 %v1090, %v1089
  %v1105 = vpack.c.b16 %v1092, %v1091
  %v1106 = vpack.c.b16 %v1094, %v1093
  %v1107 = vpack.c.b16 %v1096, %v1095
  %v1108 = vpack.c.b16 %v1098, %v1097
  %v1109 = vpack.c.b16 %v1100, %v1099
  %v1110 = vpack.c.b16 %v1102, %v1101
  %1119 = vmatprep.subr.bf16.mxu0 0
  %1120 = vmatpush1.bf16.msra.mxu0 %v1110
  %1121 = vmatprep.subr.bf16.mxu0 0
  %1122 = vmatpush1.bf16.msra.mxu0 %v1109
  %1123 = vmatprep.subr.bf16.mxu0 0
  %1124 = vmatpush1.bf16.msra.mxu0 %v1108
  %1125 = vmatprep.subr.bf16.mxu0 0
  %1126 = vmatpush1.bf16.msra.mxu0 %v1107
  %1127 = vmatprep.subr.bf16.mxu0 0
  %1128 = vmatpush1.bf16.msra.mxu0 %v1106
  %1129 = vmatprep.subr.bf16.mxu0 0
  %1130 = vmatpush1.bf16.msra.mxu0 %v1105
  %1131 = vmatprep.subr.bf16.mxu0 0
  %1132 = vmatpush1.bf16.msra.mxu0 %v1104
  %1133 = vmatprep.subr.bf16.mxu0 0
  %1134 = vmatpush1.bf16.msra.mxu0 %v1103
  %1135 = vmatprep.subr.bf16.mxu0 0
  %1136 = vmatpush2.bf16.msra.mxu0 0
  %1137 = vmatprep.subr.bf16.mxu0 0
  %1138 = vmatpush2.bf16.msra.mxu0 0
  %1139 = vmatprep.subr.bf16.mxu0 0
  %1140 = vmatpush2.bf16.msra.mxu0 0
  %1141 = vmatprep.subr.bf16.mxu0 0
  %1142 = vmatpush2.bf16.msra.mxu0 0
  %1143 = vmatprep.subr.bf16.mxu0 0
  %1144 = vmatpush2.bf16.msra.mxu0 0
  %1145 = vmatprep.subr.bf16.mxu0 0
  %1146 = vmatpush2.bf16.msra.mxu0 0
  %1147 = vmatprep.subr.bf16.mxu0 0
  %1148 = vmatpush2.bf16.msra.mxu0 0
  %1149 = vmatprep.subr.bf16.mxu0 0
  %1150 = vmatpush2.bf16.msra.mxu0 0
  %1151 = vmatprep.mubr.bf16.mxu0 0
  %1152 = vmatmul.mubr.bf16.gmra.mxu0 %v323
  %v1153 = vpop.f32.mrf.mxu0
  %v1154 = vadd.f32 0.0, %v1153
  %v1155 = vpop.f32.mrf.mxu0
  %v1156 = vpop.f32.mrf.mxu0
  %v1157 = vpop.f32.mrf.mxu0
  %1158 = vdwg.mxu0
  %v1175 = vunpack.c.l.b16 %v471
  %v1176 = vunpack.c.l.b16 %v472
  %v1177 = vunpack.c.l.b16 %v473
  %v1178 = vunpack.c.l.b16 %v474
  %v1179 = vunpack.c.l.b16 %v475
  %v1180 = vunpack.c.l.b16 %v476
  %v1181 = vunpack.c.l.b16 %v477
  %v1182 = vunpack.c.l.b16 %v478
  %v1183 = vunpack.c.l.b16 %v479
  %v1184 = vunpack.c.l.b16 %v480
  %v1185 = vunpack.c.l.b16 %v481
  %v1186 = vunpack.c.l.b16 %v482
  %v1187 = vunpack.c.l.b16 %v483
  %v1188 = vunpack.c.l.b16 %v484
  %v1189 = vunpack.c.l.b16 %v485
  %v1190 = vunpack.c.l.b16 %v486
  %v1191 = vpack.c.b16 %v1176, %v1175
  %v1192 = vpack.c.b16 %v1178, %v1177
  %v1193 = vpack.c.b16 %v1180, %v1179
  %v1194 = vpack.c.b16 %v1182, %v1181
  %v1195 = vpack.c.b16 %v1184, %v1183
  %v1196 = vpack.c.b16 %v1186, %v1185
  %v1197 = vpack.c.b16 %v1188, %v1187
  %v1198 = vpack.c.b16 %v1190, %v1189
  %1207 = vmatprep.subr.bf16.mxu0 0
  %1208 = vmatpush1.bf16.msra.mxu0 %v1198
  %1209 = vmatprep.subr.bf16.mxu0 0
  %1210 = vmatpush1.bf16.msra.mxu0 %v1197
  %1211 = vmatprep.subr.bf16.mxu0 0
  %1212 = vmatpush1.bf16.msra.mxu0 %v1196
  %1213 = vmatprep.subr.bf16.mxu0 0
  %1214 = vmatpush1.bf16.msra.mxu0 %v1195
  %1215 = vmatprep.subr.bf16.mxu0 0
  %1216 = vmatpush1.bf16.msra.mxu0 %v1194
  %1217 = vmatprep.subr.bf16.mxu0 0
  %1218 = vmatpush1.bf16.msra.mxu0 %v1193
  %1219 = vmatprep.subr.bf16.mxu0 0
  %1220 = vmatpush1.bf16.msra.mxu0 %v1192
  %1221 = vmatprep.subr.bf16.mxu0 0
  %1222 = vmatpush1.bf16.msra.mxu0 %v1191
  %1223 = vmatprep.subr.bf16.mxu0 0
  %1224 = vmatpush2.bf16.msra.mxu0 0
  %1225 = vmatprep.subr.bf16.mxu0 0
  %1226 = vmatpush2.bf16.msra.mxu0 0
  %1227 = vmatprep.subr.bf16.mxu0 0
  %1228 = vmatpush2.bf16.msra.mxu0 0
  %1229 = vmatprep.subr.bf16.mxu0 0
  %1230 = vmatpush2.bf16.msra.mxu0 0
  %1231 = vmatprep.subr.bf16.mxu0 0
  %1232 = vmatpush2.bf16.msra.mxu0 0
  %1233 = vmatprep.subr.bf16.mxu0 0
  %1234 = vmatpush2.bf16.msra.mxu0 0
  %1235 = vmatprep.subr.bf16.mxu0 0
  %1236 = vmatpush2.bf16.msra.mxu0 0
  %1237 = vmatprep.subr.bf16.mxu0 0
  %1238 = vmatpush2.bf16.msra.mxu0 0
  %1239 = vmatprep.mubr.bf16.mxu0 0
  %1240 = vmatmul.mubr.bf16.gmra.mxu0 %v322
  %v1241 = vpop.f32.mrf.mxu0
  %v1242 = vadd.f32 0.0, %v1241
  %v1243 = vpop.f32.mrf.mxu0
  %v1244 = vpop.f32.mrf.mxu0
  %v1245 = vpop.f32.mrf.mxu0
  %1246 = vdwg.mxu0
  %v1263 = vunpack.c.l.b16 %v487
  %v1264 = vunpack.c.l.b16 %v488
  %v1265 = vunpack.c.l.b16 %v489
  %v1266 = vunpack.c.l.b16 %v490
  %v1267 = vunpack.c.l.b16 %v491
  %v1268 = vunpack.c.l.b16 %v492
  %v1269 = vunpack.c.l.b16 %v493
  %v1270 = vunpack.c.l.b16 %v494
  %v1271 = vunpack.c.l.b16 %v495
  %v1272 = vunpack.c.l.b16 %v496
  %v1273 = vunpack.c.l.b16 %v497
  %v1274 = vunpack.c.l.b16 %v498
  %v1275 = vunpack.c.l.b16 %v499
  %v1276 = vunpack.c.l.b16 %v500
  %v1277 = vunpack.c.l.b16 %v501
  %v1278 = vunpack.c.l.b16 %v502
  %v1279 = vpack.c.b16 %v1264, %v1263
  %v1280 = vpack.c.b16 %v1266, %v1265
  %v1281 = vpack.c.b16 %v1268, %v1267
  %v1282 = vpack.c.b16 %v1270, %v1269
  %v1283 = vpack.c.b16 %v1272, %v1271
  %v1284 = vpack.c.b16 %v1274, %v1273
  %v1285 = vpack.c.b16 %v1276, %v1275
  %v1286 = vpack.c.b16 %v1278, %v1277
  %1295 = vmatprep.subr.bf16.mxu0 0
  %1296 = vmatpush1.bf16.msra.mxu0 %v1286
  %1297 = vmatprep.subr.bf16.mxu0 0
  %1298 = vmatpush1.bf16.msra.mxu0 %v1285
  %1299 = vmatprep.subr.bf16.mxu0 0
  %1300 = vmatpush1.bf16.msra.mxu0 %v1284
  %1301 = vmatprep.subr.bf16.mxu0 0
  %1302 = vmatpush1.bf16.msra.mxu0 %v1283
  %1303 = vmatprep.subr.bf16.mxu0 0
  %1304 = vmatpush1.bf16.msra.mxu0 %v1282
  %1305 = vmatprep.subr.bf16.mxu0 0
  %1306 = vmatpush1.bf16.msra.mxu0 %v1281
  %1307 = vmatprep.subr.bf16.mxu0 0
  %1308 = vmatpush1.bf16.msra.mxu0 %v1280
  %1309 = vmatprep.subr.bf16.mxu0 0
  %1310 = vmatpush1.bf16.msra.mxu0 %v1279
  %1311 = vmatprep.subr.bf16.mxu0 0
  %1312 = vmatpush2.bf16.msra.mxu0 0
  %1313 = vmatprep.subr.bf16.mxu0 0
  %1314 = vmatpush2.bf16.msra.mxu0 0
  %1315 = vmatprep.subr.bf16.mxu0 0
  %1316 = vmatpush2.bf16.msra.mxu0 0
  %1317 = vmatprep.subr.bf16.mxu0 0
  %1318 = vmatpush2.bf16.msra.mxu0 0
  %1319 = vmatprep.subr.bf16.mxu0 0
  %1320 = vmatpush2.bf16.msra.mxu0 0
  %1321 = vmatprep.subr.bf16.mxu0 0
  %1322 = vmatpush2.bf16.msra.mxu0 0
  %1323 = vmatprep.subr.bf16.mxu0 0
  %1324 = vmatpush2.bf16.msra.mxu0 0
  %1325 = vmatprep.subr.bf16.mxu0 0
  %1326 = vmatpush2.bf16.msra.mxu0 0
  %1327 = vmatprep.mubr.bf16.mxu0 0
  %1328 = vmatmul.mubr.bf16.gmra.mxu0 %v324
  %v1329 = vpop.f32.mrf.mxu0
  %v1330 = vadd.f32 0.0, %v1329
  %v1331 = vpop.f32.mrf.mxu0
  %v1332 = vpop.f32.mrf.mxu0
  %v1333 = vpop.f32.mrf.mxu0
  %1334 = vdwg.mxu0
  %v1351 = vunpack.c.l.b16 %v503
  %v1352 = vunpack.c.l.b16 %v504
  %v1353 = vunpack.c.l.b16 %v505
  %v1354 = vunpack.c.l.b16 %v506
  %v1355 = vunpack.c.l.b16 %v507
  %v1356 = vunpack.c.l.b16 %v508
  %v1357 = vunpack.c.l.b16 %v509
  %v1358 = vunpack.c.l.b16 %v510
  %v1359 = vunpack.c.l.b16 %v511
  %v1360 = vunpack.c.l.b16 %v512
  %v1361 = vunpack.c.l.b16 %v513
  %v1362 = vunpack.c.l.b16 %v514
  %v1363 = vunpack.c.l.b16 %v515
  %v1364 = vunpack.c.l.b16 %v516
  %v1365 = vunpack.c.l.b16 %v517
  %v1366 = vunpack.c.l.b16 %v518
  %v1367 = vpack.c.b16 %v1352, %v1351
  %v1368 = vpack.c.b16 %v1354, %v1353
  %v1369 = vpack.c.b16 %v1356, %v1355
  %v1370 = vpack.c.b16 %v1358, %v1357
  %v1371 = vpack.c.b16 %v1360, %v1359
  %v1372 = vpack.c.b16 %v1362, %v1361
  %v1373 = vpack.c.b16 %v1364, %v1363
  %v1374 = vpack.c.b16 %v1366, %v1365
  %1383 = vmatprep.subr.bf16.mxu0 0
  %1384 = vmatpush1.bf16.msra.mxu0 %v1374
  %1385 = vmatprep.subr.bf16.mxu0 0
  %1386 = vmatpush1.bf16.msra.mxu0 %v1373
  %1387 = vmatprep.subr.bf16.mxu0 0
  %1388 = vmatpush1.bf16.msra.mxu0 %v1372
  %1389 = vmatprep.subr.bf16.mxu0 0
  %1390 = vmatpush1.bf16.msra.mxu0 %v1371
  %1391 = vmatprep.subr.bf16.mxu0 0
  %1392 = vmatpush1.bf16.msra.mxu0 %v1370
  %1393 = vmatprep.subr.bf16.mxu0 0
  %1394 = vmatpush1.bf16.msra.mxu0 %v1369
  %1395 = vmatprep.subr.bf16.mxu0 0
  %1396 = vmatpush1.bf16.msra.mxu0 %v1368
  %1397 = vmatprep.subr.bf16.mxu0 0
  %1398 = vmatpush1.bf16.msra.mxu0 %v1367
  %1399 = vmatprep.subr.bf16.mxu0 0
  %1400 = vmatpush2.bf16.msra.mxu0 0
  %1401 = vmatprep.subr.bf16.mxu0 0
  %1402 = vmatpush2.bf16.msra.mxu0 0
  %1403 = vmatprep.subr.bf16.mxu0 0
  %1404 = vmatpush2.bf16.msra.mxu0 0
  %1405 = vmatprep.subr.bf16.mxu0 0
  %1406 = vmatpush2.bf16.msra.mxu0 0
  %1407 = vmatprep.subr.bf16.mxu0 0
  %1408 = vmatpush2.bf16.msra.mxu0 0
  %1409 = vmatprep.subr.bf16.mxu0 0
  %1410 = vmatpush2.bf16.msra.mxu0 0
  %1411 = vmatprep.subr.bf16.mxu0 0
  %1412 = vmatpush2.bf16.msra.mxu0 0
  %1413 = vmatprep.subr.bf16.mxu0 0
  %1414 = vmatpush2.bf16.msra.mxu0 0
  %1415 = vmatprep.mubr.bf16.mxu0 0
  %1416 = vmatmul.mubr.bf16.gmra.mxu0 %v332
  %v1417 = vpop.f32.mrf.mxu0
  %v1418 = vadd.f32 0.0, %v1417
  %v1419 = vpop.f32.mrf.mxu0
  %v1420 = vpop.f32.mrf.mxu0
  %v1421 = vpop.f32.mrf.mxu0
  %1422 = vdwg.mxu0
  %v1439 = vunpack.c.l.b16 %v519
  %v1440 = vunpack.c.l.b16 %v520
  %v1441 = vunpack.c.l.b16 %v521
  %v1442 = vunpack.c.l.b16 %v522
  %v1443 = vunpack.c.l.b16 %v523
  %v1444 = vunpack.c.l.b16 %v524
  %v1445 = vunpack.c.l.b16 %v525
  %v1446 = vunpack.c.l.b16 %v526
  %v1447 = vunpack.c.l.b16 %v527
  %v1448 = vunpack.c.l.b16 %v528
  %v1449 = vunpack.c.l.b16 %v529
  %v1450 = vunpack.c.l.b16 %v530
  %v1451 = vunpack.c.l.b16 %v531
  %v1452 = vunpack.c.l.b16 %v532
  %v1453 = vunpack.c.l.b16 %v533
  %v1454 = vunpack.c.l.b16 %v534
  %v1455 = vpack.c.b16 %v1440, %v1439
  %v1456 = vpack.c.b16 %v1442, %v1441
  %v1457 = vpack.c.b16 %v1444, %v1443
  %v1458 = vpack.c.b16 %v1446, %v1445
  %v1459 = vpack.c.b16 %v1448, %v1447
  %v1460 = vpack.c.b16 %v1450, %v1449
  %v1461 = vpack.c.b16 %v1452, %v1451
  %v1462 = vpack.c.b16 %v1454, %v1453
  %1471 = vmatprep.subr.bf16.mxu0 0
  %1472 = vmatpush1.bf16.msra.mxu0 %v1462
  %1473 = vmatprep.subr.bf16.mxu0 0
  %1474 = vmatpush1.bf16.msra.mxu0 %v1461
  %1475 = vmatprep.subr.bf16.mxu0 0
  %1476 = vmatpush1.bf16.msra.mxu0 %v1460
  %1477 = vmatprep.subr.bf16.mxu0 0
  %1478 = vmatpush1.bf16.msra.mxu0 %v1459
  %1479 = vmatprep.subr.bf16.mxu0 0
  %1480 = vmatpush1.bf16.msra.mxu0 %v1458
  %1481 = vmatprep.subr.bf16.mxu0 0
  %1482 = vmatpush1.bf16.msra.mxu0 %v1457
  %1483 = vmatprep.subr.bf16.mxu0 0
  %1484 = vmatpush1.bf16.msra.mxu0 %v1456
  %1485 = vmatprep.subr.bf16.mxu0 0
  %1486 = vmatpush1.bf16.msra.mxu0 %v1455
  %1487 = vmatprep.subr.bf16.mxu0 0
  %1488 = vmatpush2.bf16.msra.mxu0 0
  %1489 = vmatprep.subr.bf16.mxu0 0
  %1490 = vmatpush2.bf16.msra.mxu0 0
  %1491 = vmatprep.subr.bf16.mxu0 0
  %1492 = vmatpush2.bf16.msra.mxu0 0
  %1493 = vmatprep.subr.bf16.mxu0 0
  %1494 = vmatpush2.bf16.msra.mxu0 0
  %1495 = vmatprep.subr.bf16.mxu0 0
  %1496 = vmatpush2.bf16.msra.mxu0 0
  %1497 = vmatprep.subr.bf16.mxu0 0
  %1498 = vmatpush2.bf16.msra.mxu0 0
  %1499 = vmatprep.subr.bf16.mxu0 0
  %1500 = vmatpush2.bf16.msra.mxu0 0
  %1501 = vmatprep.subr.bf16.mxu0 0
  %1502 = vmatpush2.bf16.msra.mxu0 0
  %1503 = vmatprep.mubr.bf16.mxu0 0
  %1504 = vmatmul.mubr.bf16.gmra.mxu0 %v340
  %v1505 = vpop.f32.mrf.mxu0
  %v1506 = vadd.f32 0.0, %v1505
  %v1507 = vpop.f32.mrf.mxu0
  %v1508 = vpop.f32.mrf.mxu0
  %v1509 = vpop.f32.mrf.mxu0
  %1510 = vdwg.mxu0
  %v1527 = vunpack.c.l.b16 %v535
  %v1528 = vunpack.c.l.b16 %v536
  %v1529 = vunpack.c.l.b16 %v537
  %v1530 = vunpack.c.l.b16 %v538
  %v1531 = vunpack.c.l.b16 %v539
  %v1532 = vunpack.c.l.b16 %v540
  %v1533 = vunpack.c.l.b16 %v541
  %v1534 = vunpack.c.l.b16 %v542
  %v1535 = vunpack.c.l.b16 %v543
  %v1536 = vunpack.c.l.b16 %v544
  %v1537 = vunpack.c.l.b16 %v545
  %v1538 = vunpack.c.l.b16 %v546
  %v1539 = vunpack.c.l.b16 %v547
  %v1540 = vunpack.c.l.b16 %v548
  %v1541 = vunpack.c.l.b16 %v549
  %v1542 = vunpack.c.l.b16 %v550
  %v1543 = vpack.c.b16 %v1528, %v1527
  %v1544 = vpack.c.b16 %v1530, %v1529
  %v1545 = vpack.c.b16 %v1532, %v1531
  %v1546 = vpack.c.b16 %v1534, %v1533
  %v1547 = vpack.c.b16 %v1536, %v1535
  %v1548 = vpack.c.b16 %v1538, %v1537
  %v1549 = vpack.c.b16 %v1540, %v1539
  %v1550 = vpack.c.b16 %v1542, %v1541
  %1559 = vmatprep.subr.bf16.mxu0 0
  %1560 = vmatpush1.bf16.msra.mxu0 %v1550
  %1561 = vmatprep.subr.bf16.mxu0 0
  %1562 = vmatpush1.bf16.msra.mxu0 %v1549
  %1563 = vmatprep.subr.bf16.mxu0 0
  %1564 = vmatpush1.bf16.msra.mxu0 %v1548
  %1565 = vmatprep.subr.bf16.mxu0 0
  %1566 = vmatpush1.bf16.msra.mxu0 %v1547
  %1567 = vmatprep.subr.bf16.mxu0 0
  %1568 = vmatpush1.bf16.msra.mxu0 %v1546
  %1569 = vmatprep.subr.bf16.mxu0 0
  %1570 = vmatpush1.bf16.msra.mxu0 %v1545
  %1571 = vmatprep.subr.bf16.mxu0 0
  %1572 = vmatpush1.bf16.msra.mxu0 %v1544
  %1573 = vmatprep.subr.bf16.mxu0 0
  %1574 = vmatpush1.bf16.msra.mxu0 %v1543
  %1575 = vmatprep.subr.bf16.mxu0 0
  %1576 = vmatpush2.bf16.msra.mxu0 0
  %1577 = vmatprep.subr.bf16.mxu0 0
  %1578 = vmatpush2.bf16.msra.mxu0 0
  %1579 = vmatprep.subr.bf16.mxu0 0
  %1580 = vmatpush2.bf16.msra.mxu0 0
  %1581 = vmatprep.subr.bf16.mxu0 0
  %1582 = vmatpush2.bf16.msra.mxu0 0
  %1583 = vmatprep.subr.bf16.mxu0 0
  %1584 = vmatpush2.bf16.msra.mxu0 0
  %1585 = vmatprep.subr.bf16.mxu0 0
  %1586 = vmatpush2.bf16.msra.mxu0 0
  %1587 = vmatprep.subr.bf16.mxu0 0
  %1588 = vmatpush2.bf16.msra.mxu0 0
  %1589 = vmatprep.subr.bf16.mxu0 0
  %1590 = vmatpush2.bf16.msra.mxu0 0
  %1591 = vmatprep.mubr.bf16.mxu0 0
  %1592 = vmatmul.mubr.bf16.gmra.mxu0 %v339
  %v1593 = vpop.f32.mrf.mxu0
  %v1594 = vadd.f32 0.0, %v1593
  %v1595 = vpop.f32.mrf.mxu0
  %v1596 = vpop.f32.mrf.mxu0
  %v1597 = vpop.f32.mrf.mxu0
  %1598 = vdwg.mxu0
  %v1615 = vunpack.c.l.b16 %v551
  %v1616 = vunpack.c.l.b16 %v552
  %v1617 = vunpack.c.l.b16 %v553
  %v1618 = vunpack.c.l.b16 %v554
  %v1619 = vunpack.c.l.b16 %v555
  %v1620 = vunpack.c.l.b16 %v556
  %v1621 = vunpack.c.l.b16 %v557
  %v1622 = vunpack.c.l.b16 %v558
  %v1623 = vunpack.c.l.b16 %v559
  %v1624 = vunpack.c.l.b16 %v560
  %v1625 = vunpack.c.l.b16 %v561
  %v1626 = vunpack.c.l.b16 %v562
  %v1627 = vunpack.c.l.b16 %v563
  %v1628 = vunpack.c.l.b16 %v564
  %v1629 = vunpack.c.l.b16 %v565
  %v1630 = vunpack.c.l.b16 %v566
  %v1631 = vpack.c.b16 %v1616, %v1615
  %v1632 = vpack.c.b16 %v1618, %v1617
  %v1633 = vpack.c.b16 %v1620, %v1619
  %v1634 = vpack.c.b16 %v1622, %v1621
  %v1635 = vpack.c.b16 %v1624, %v1623
  %v1636 = vpack.c.b16 %v1626, %v1625
  %v1637 = vpack.c.b16 %v1628, %v1627
  %v1638 = vpack.c.b16 %v1630, %v1629
  %1647 = vmatprep.subr.bf16.mxu0 0
  %1648 = vmatpush1.bf16.msra.mxu0 %v1638
  %1649 = vmatprep.subr.bf16.mxu0 0
  %1650 = vmatpush1.bf16.msra.mxu0 %v1637
  %1651 = vmatprep.subr.bf16.mxu0 0
  %1652 = vmatpush1.bf16.msra.mxu0 %v1636
  %1653 = vmatprep.subr.bf16.mxu0 0
  %1654 = vmatpush1.bf16.msra.mxu0 %v1635
  %1655 = vmatprep.subr.bf16.mxu0 0
  %1656 = vmatpush1.bf16.msra.mxu0 %v1634
  %1657 = vmatprep.subr.bf16.mxu0 0
  %1658 = vmatpush1.bf16.msra.mxu0 %v1633
  %1659 = vmatprep.subr.bf16.mxu0 0
  %1660 = vmatpush1.bf16.msra.mxu0 %v1632
  %1661 = vmatprep.subr.bf16.mxu0 0
  %1662 = vmatpush1.bf16.msra.mxu0 %v1631
  %1663 = vmatprep.subr.bf16.mxu0 0
  %1664 = vmatpush2.bf16.msra.mxu0 0
  %1665 = vmatprep.subr.bf16.mxu0 0
  %1666 = vmatpush2.bf16.msra.mxu0 0
  %1667 = vmatprep.subr.bf16.mxu0 0
  %1668 = vmatpush2.bf16.msra.mxu0 0
  %1669 = vmatprep.subr.bf16.mxu0 0
  %1670 = vmatpush2.bf16.msra.mxu0 0
  %1671 = vmatprep.subr.bf16.mxu0 0
  %1672 = vmatpush2.bf16.msra.mxu0 0
  %1673 = vmatprep.subr.bf16.mxu0 0
  %1674 = vmatpush2.bf16.msra.mxu0 0
  %1675 = vmatprep.subr.bf16.mxu0 0
  %1676 = vmatpush2.bf16.msra.mxu0 0
  %1677 = vmatprep.subr.bf16.mxu0 0
  %1678 = vmatpush2.bf16.msra.mxu0 0
  %1679 = vmatprep.mubr.bf16.mxu0 0
  %1680 = vmatmul.mubr.bf16.gmra.mxu0 %v341
  %v1681 = vpop.f32.mrf.mxu0
  %v1682 = vadd.f32 0.0, %v1681
  %v1683 = vpop.f32.mrf.mxu0
  %v1684 = vpop.f32.mrf.mxu0
  %v1685 = vpop.f32.mrf.mxu0
  %1686 = vdwg.mxu0
  %v1703 = vunpack.c.l.b16 %v567
  %v1704 = vunpack.c.l.b16 %v568
  %v1705 = vunpack.c.l.b16 %v569
  %v1706 = vunpack.c.l.b16 %v570
  %v1707 = vunpack.c.l.b16 %v571
  %v1708 = vunpack.c.l.b16 %v572
  %v1709 = vunpack.c.l.b16 %v573
  %v1710 = vunpack.c.l.b16 %v574
  %v1711 = vunpack.c.l.b16 %v575
  %v1712 = vunpack.c.l.b16 %v576
  %v1713 = vunpack.c.l.b16 %v577
  %v1714 = vunpack.c.l.b16 %v578
  %v1715 = vunpack.c.l.b16 %v579
  %v1716 = vunpack.c.l.b16 %v580
  %v1717 = vunpack.c.l.b16 %v581
  %v1718 = vunpack.c.l.b16 %v582
  %v1719 = vpack.c.b16 %v1704, %v1703
  %v1720 = vpack.c.b16 %v1706, %v1705
  %v1721 = vpack.c.b16 %v1708, %v1707
  %v1722 = vpack.c.b16 %v1710, %v1709
  %v1723 = vpack.c.b16 %v1712, %v1711
  %v1724 = vpack.c.b16 %v1714, %v1713
  %v1725 = vpack.c.b16 %v1716, %v1715
  %v1726 = vpack.c.b16 %v1718, %v1717
  %1735 = vmatprep.subr.bf16.mxu0 0
  %1736 = vmatpush1.bf16.msra.mxu0 %v1726
  %1737 = vmatprep.subr.bf16.mxu0 0
  %1738 = vmatpush1.bf16.msra.mxu0 %v1725
  %1739 = vmatprep.subr.bf16.mxu0 0
  %1740 = vmatpush1.bf16.msra.mxu0 %v1724
  %1741 = vmatprep.subr.bf16.mxu0 0
  %1742 = vmatpush1.bf16.msra.mxu0 %v1723
  %1743 = vmatprep.subr.bf16.mxu0 0
  %1744 = vmatpush1.bf16.msra.mxu0 %v1722
  %1745 = vmatprep.subr.bf16.mxu0 0
  %1746 = vmatpush1.bf16.msra.mxu0 %v1721
  %1747 = vmatprep.subr.bf16.mxu0 0
  %1748 = vmatpush1.bf16.msra.mxu0 %v1720
  %1749 = vmatprep.subr.bf16.mxu0 0
  %1750 = vmatpush1.bf16.msra.mxu0 %v1719
  %1751 = vmatprep.subr.bf16.mxu0 0
  %1752 = vmatpush2.bf16.msra.mxu0 0
  %1753 = vmatprep.subr.bf16.mxu0 0
  %1754 = vmatpush2.bf16.msra.mxu0 0
  %1755 = vmatprep.subr.bf16.mxu0 0
  %1756 = vmatpush2.bf16.msra.mxu0 0
  %1757 = vmatprep.subr.bf16.mxu0 0
  %1758 = vmatpush2.bf16.msra.mxu0 0
  %1759 = vmatprep.subr.bf16.mxu0 0
  %1760 = vmatpush2.bf16.msra.mxu0 0
  %1761 = vmatprep.subr.bf16.mxu0 0
  %1762 = vmatpush2.bf16.msra.mxu0 0
  %1763 = vmatprep.subr.bf16.mxu0 0
  %1764 = vmatpush2.bf16.msra.mxu0 0
  %1765 = vmatprep.subr.bf16.mxu0 0
  %1766 = vmatpush2.bf16.msra.mxu0 0
  %1767 = vmatprep.mubr.bf16.mxu0 0
  %1768 = vmatmul.mubr.bf16.gmra.mxu0 %v349
  %v1769 = vpop.f32.mrf.mxu0
  %v1770 = vadd.f32 0.0, %v1769
  %v1771 = vpop.f32.mrf.mxu0
  %v1772 = vpop.f32.mrf.mxu0
  %v1773 = vpop.f32.mrf.mxu0
  %1774 = vdwg.mxu0
  %v1791 = vunpack.c.l.b16 %v583
  %v1792 = vunpack.c.l.b16 %v584
  %v1793 = vunpack.c.l.b16 %v585
  %v1794 = vunpack.c.l.b16 %v586
  %v1795 = vunpack.c.l.b16 %v587
  %v1796 = vunpack.c.l.b16 %v588
  %v1797 = vunpack.c.l.b16 %v589
  %v1798 = vunpack.c.l.b16 %v590
  %v1799 = vunpack.c.l.b16 %v591
  %v1800 = vunpack.c.l.b16 %v592
  %v1801 = vunpack.c.l.b16 %v593
  %v1802 = vunpack.c.l.b16 %v594
  %v1803 = vunpack.c.l.b16 %v595
  %v1804 = vunpack.c.l.b16 %v596
  %v1805 = vunpack.c.l.b16 %v597
  %v1806 = vunpack.c.l.b16 %v598
  %v1807 = vpack.c.b16 %v1792, %v1791
  %v1808 = vpack.c.b16 %v1794, %v1793
  %v1809 = vpack.c.b16 %v1796, %v1795
  %v1810 = vpack.c.b16 %v1798, %v1797
  %v1811 = vpack.c.b16 %v1800, %v1799
  %v1812 = vpack.c.b16 %v1802, %v1801
  %v1813 = vpack.c.b16 %v1804, %v1803
  %v1814 = vpack.c.b16 %v1806, %v1805
  %1823 = vmatprep.subr.bf16.mxu0 0
  %1824 = vmatpush1.bf16.msra.mxu0 %v1814
  %1825 = vmatprep.subr.bf16.mxu0 0
  %1826 = vmatpush1.bf16.msra.mxu0 %v1813
  %1827 = vmatprep.subr.bf16.mxu0 0
  %1828 = vmatpush1.bf16.msra.mxu0 %v1812
  %1829 = vmatprep.subr.bf16.mxu0 0
  %1830 = vmatpush1.bf16.msra.mxu0 %v1811
  %1831 = vmatprep.subr.bf16.mxu0 0
  %1832 = vmatpush1.bf16.msra.mxu0 %v1810
  %1833 = vmatprep.subr.bf16.mxu0 0
  %1834 = vmatpush1.bf16.msra.mxu0 %v1809
  %1835 = vmatprep.subr.bf16.mxu0 0
  %1836 = vmatpush1.bf16.msra.mxu0 %v1808
  %1837 = vmatprep.subr.bf16.mxu0 0
  %1838 = vmatpush1.bf16.msra.mxu0 %v1807
  %1839 = vmatprep.subr.bf16.mxu0 0
  %1840 = vmatpush2.bf16.msra.mxu0 0
  %1841 = vmatprep.subr.bf16.mxu0 0
  %1842 = vmatpush2.bf16.msra.mxu0 0
  %1843 = vmatprep.subr.bf16.mxu0 0
  %1844 = vmatpush2.bf16.msra.mxu0 0
  %1845 = vmatprep.subr.bf16.mxu0 0
  %1846 = vmatpush2.bf16.msra.mxu0 0
  %1847 = vmatprep.subr.bf16.mxu0 0
  %1848 = vmatpush2.bf16.msra.mxu0 0
  %1849 = vmatprep.subr.bf16.mxu0 0
  %1850 = vmatpush2.bf16.msra.mxu0 0
  %1851 = vmatprep.subr.bf16.mxu0 0
  %1852 = vmatpush2.bf16.msra.mxu0 0
  %1853 = vmatprep.subr.bf16.mxu0 0
  %1854 = vmatpush2.bf16.msra.mxu0 0
  %1855 = vmatprep.mubr.bf16.mxu0 0
  %1856 = vmatmul.mubr.bf16.gmra.mxu0 %v357
  %v1857 = vpop.f32.mrf.mxu0
  %v1858 = vadd.f32 0.0, %v1857
  %v1859 = vpop.f32.mrf.mxu0
  %v1860 = vpop.f32.mrf.mxu0
  %v1861 = vpop.f32.mrf.mxu0
  %1862 = vdwg.mxu0
  %v1879 = vunpack.c.l.b16 %v599
  %v1880 = vunpack.c.l.b16 %v600
  %v1881 = vunpack.c.l.b16 %v601
  %v1882 = vunpack.c.l.b16 %v602
  %v1883 = vunpack.c.l.b16 %v603
  %v1884 = vunpack.c.l.b16 %v604
  %v1885 = vunpack.c.l.b16 %v605
  %v1886 = vunpack.c.l.b16 %v606
  %v1887 = vunpack.c.l.b16 %v607
  %v1888 = vunpack.c.l.b16 %v608
  %v1889 = vunpack.c.l.b16 %v609
  %v1890 = vunpack.c.l.b16 %v610
  %v1891 = vunpack.c.l.b16 %v611
  %v1892 = vunpack.c.l.b16 %v612
  %v1893 = vunpack.c.l.b16 %v613
  %v1894 = vunpack.c.l.b16 %v614
  %v1895 = vpack.c.b16 %v1880, %v1879
  %v1896 = vpack.c.b16 %v1882, %v1881
  %v1897 = vpack.c.b16 %v1884, %v1883
  %v1898 = vpack.c.b16 %v1886, %v1885
  %v1899 = vpack.c.b16 %v1888, %v1887
  %v1900 = vpack.c.b16 %v1890, %v1889
  %v1901 = vpack.c.b16 %v1892, %v1891
  %v1902 = vpack.c.b16 %v1894, %v1893
  %1911 = vmatprep.subr.bf16.mxu0 0
  %1912 = vmatpush1.bf16.msra.mxu0 %v1902
  %1913 = vmatprep.subr.bf16.mxu0 0
  %1914 = vmatpush1.bf16.msra.mxu0 %v1901
  %1915 = vmatprep.subr.bf16.mxu0 0
  %1916 = vmatpush1.bf16.msra.mxu0 %v1900
  %1917 = vmatprep.subr.bf16.mxu0 0
  %1918 = vmatpush1.bf16.msra.mxu0 %v1899
  %1919 = vmatprep.subr.bf16.mxu0 0
  %1920 = vmatpush1.bf16.msra.mxu0 %v1898
  %1921 = vmatprep.subr.bf16.mxu0 0
  %1922 = vmatpush1.bf16.msra.mxu0 %v1897
  %1923 = vmatprep.subr.bf16.mxu0 0
  %1924 = vmatpush1.bf16.msra.mxu0 %v1896
  %1925 = vmatprep.subr.bf16.mxu0 0
  %1926 = vmatpush1.bf16.msra.mxu0 %v1895
  %1927 = vmatprep.subr.bf16.mxu0 0
  %1928 = vmatpush2.bf16.msra.mxu0 0
  %1929 = vmatprep.subr.bf16.mxu0 0
  %1930 = vmatpush2.bf16.msra.mxu0 0
  %1931 = vmatprep.subr.bf16.mxu0 0
  %1932 = vmatpush2.bf16.msra.mxu0 0
  %1933 = vmatprep.subr.bf16.mxu0 0
  %1934 = vmatpush2.bf16.msra.mxu0 0
  %1935 = vmatprep.subr.bf16.mxu0 0
  %1936 = vmatpush2.bf16.msra.mxu0 0
  %1937 = vmatprep.subr.bf16.mxu0 0
  %1938 = vmatpush2.bf16.msra.mxu0 0
  %1939 = vmatprep.subr.bf16.mxu0 0
  %1940 = vmatpush2.bf16.msra.mxu0 0
  %1941 = vmatprep.subr.bf16.mxu0 0
  %1942 = vmatpush2.bf16.msra.mxu0 0
  %1943 = vmatprep.mubr.bf16.mxu0 0
  %1944 = vmatmul.mubr.bf16.gmra.mxu0 %v356
  %v1945 = vpop.f32.mrf.mxu0
  %v1946 = vadd.f32 0.0, %v1945
  %v1947 = vpop.f32.mrf.mxu0
  %v1948 = vpop.f32.mrf.mxu0
  %v1949 = vpop.f32.mrf.mxu0
  %1950 = vdwg.mxu0
  %v1967 = vunpack.c.l.b16 %v615
  %v1968 = vunpack.c.l.b16 %v616
  %v1969 = vunpack.c.l.b16 %v617
  %v1970 = vunpack.c.l.b16 %v618
  %v1971 = vunpack.c.l.b16 %v619
  %v1972 = vunpack.c.l.b16 %v620
  %v1973 = vunpack.c.l.b16 %v621
  %v1974 = vunpack.c.l.b16 %v622
  %v1975 = vunpack.c.l.b16 %v623
  %v1976 = vunpack.c.l.b16 %v624
  %v1977 = vunpack.c.l.b16 %v625
  %v1978 = vunpack.c.l.b16 %v626
  %v1979 = vunpack.c.l.b16 %v627
  %v1980 = vunpack.c.l.b16 %v628
  %v1981 = vunpack.c.l.b16 %v629
  %v1982 = vunpack.c.l.b16 %v630
  %v1983 = vpack.c.b16 %v1968, %v1967
  %v1984 = vpack.c.b16 %v1970, %v1969
  %v1985 = vpack.c.b16 %v1972, %v1971
  %v1986 = vpack.c.b16 %v1974, %v1973
  %v1987 = vpack.c.b16 %v1976, %v1975
  %v1988 = vpack.c.b16 %v1978, %v1977
  %v1989 = vpack.c.b16 %v1980, %v1979
  %v1990 = vpack.c.b16 %v1982, %v1981
  %1999 = vmatprep.subr.bf16.mxu0 0
  %2000 = vmatpush1.bf16.msra.mxu0 %v1990
  %2001 = vmatprep.subr.bf16.mxu0 0
  %2002 = vmatpush1.bf16.msra.mxu0 %v1989
  %2003 = vmatprep.subr.bf16.mxu0 0
  %2004 = vmatpush1.bf16.msra.mxu0 %v1988
  %2005 = vmatprep.subr.bf16.mxu0 0
  %2006 = vmatpush1.bf16.msra.mxu0 %v1987
  %2007 = vmatprep.subr.bf16.mxu0 0
  %2008 = vmatpush1.bf16.msra.mxu0 %v1986
  %2009 = vmatprep.subr.bf16.mxu0 0
  %2010 = vmatpush1.bf16.msra.mxu0 %v1985
  %2011 = vmatprep.subr.bf16.mxu0 0
  %2012 = vmatpush1.bf16.msra.mxu0 %v1984
  %2013 = vmatprep.subr.bf16.mxu0 0
  %2014 = vmatpush1.bf16.msra.mxu0 %v1983
  %2015 = vmatprep.subr.bf16.mxu0 0
  %2016 = vmatpush2.bf16.msra.mxu0 0
  %2017 = vmatprep.subr.bf16.mxu0 0
  %2018 = vmatpush2.bf16.msra.mxu0 0
  %2019 = vmatprep.subr.bf16.mxu0 0
  %2020 = vmatpush2.bf16.msra.mxu0 0
  %2021 = vmatprep.subr.bf16.mxu0 0
  %2022 = vmatpush2.bf16.msra.mxu0 0
  %2023 = vmatprep.subr.bf16.mxu0 0
  %2024 = vmatpush2.bf16.msra.mxu0 0
  %2025 = vmatprep.subr.bf16.mxu0 0
  %2026 = vmatpush2.bf16.msra.mxu0 0
  %2027 = vmatprep.subr.bf16.mxu0 0
  %2028 = vmatpush2.bf16.msra.mxu0 0
  %2029 = vmatprep.subr.bf16.mxu0 0
  %2030 = vmatpush2.bf16.msra.mxu0 0
  %2031 = vmatprep.mubr.bf16.mxu0 0
  %2032 = vmatmul.mubr.bf16.gmra.mxu0 %v358
  %v2033 = vpop.f32.mrf.mxu0
  %v2034 = vadd.f32 0.0, %v2033
  %v2035 = vpop.f32.mrf.mxu0
  %v2036 = vpop.f32.mrf.mxu0
  %v2037 = vpop.f32.mrf.mxu0
  %2038 = vdwg.mxu0
  %vm2039 = vcmask 257024
  %v2040 = vsel %vm2039, %v714, 0.0
  %v2041 = vsel %vm2039, %v802, 0.0
  %v2042 = vadd.f32 %v2040, %v2041
  %v2043 = vsel %vm2039, %v890, 0.0
  %v2044 = vadd.f32 %v2042, %v2043
  %v2045 = vsel %vm2039, %v978, 0.0
  %v2046 = vadd.f32 %v2044, %v2045
  %v2047 = vsel %vm2039, %v1066, 0.0
  %v2048 = vadd.f32 %v2046, %v2047
  %v2049 = vsel %vm2039, %v1154, 0.0
  %v2050 = vadd.f32 %v2048, %v2049
  %v2051 = vsel %vm2039, %v1242, 0.0
  %v2052 = vadd.f32 %v2050, %v2051
  %v2053 = vsel %vm2039, %v1330, 0.0
  %v2054 = vadd.f32 %v2052, %v2053
  %v2055 = vsel %vm2039, %v1418, 0.0
  %v2056 = vadd.f32 %v2054, %v2055
  %v2057 = vsel %vm2039, %v1506, 0.0
  %v2058 = vadd.f32 %v2056, %v2057
  %v2059 = vsel %vm2039, %v1594, 0.0
  %v2060 = vadd.f32 %v2058, %v2059
  %v2061 = vsel %vm2039, %v1682, 0.0
  %v2062 = vadd.f32 %v2060, %v2061
  %v2063 = vsel %vm2039, %v1770, 0.0
  %v2064 = vadd.f32 %v2062, %v2063
  %v2065 = vsel %vm2039, %v1858, 0.0
  %v2066 = vadd.f32 %v2064, %v2065
  %v2067 = vsel %vm2039, %v1946, 0.0
  %v2068 = vadd.f32 %v2066, %v2067
  %v2069 = vsel %vm2039, %v2034, 0.0
  %v2070 = vadd.f32 %v2068, %v2069
  %v2071 = vld [vmem:[%s4] sm:$0x1]
  %v2073 = vlaneseq
  %v2074 = vshrl.u32 %v2073, 7
  %v2075 = vsub.s32 0, %v2074
  %v2076 = vrot.slane %v2071, %v2075
  %v2078 = vadd.f32 %v2070, %v2076
  %v2079 = vmax.f32 %v2078, 0.0
  %v2080 = vpack.c.bf16 %v2079, %v2079
  %v2081 = vld [vmem:[%s5] sm:$0xf]
  %v2082 = vld [vmem:[%s5 + $0x4] sm:$0xf]
  %v2083 = vld [vmem:[%s5 + $0x8] sm:$0xf]
  %v2084 = vld [vmem:[%s5 + $0xc] sm:$0xf]
  %v2085 = vld [vmem:[%s6] sm:$0x1]
  %v2087 = vlaneseq
  %v2088 = vshrl.u32 %v2087, 7
  %v2089 = vsub.s32 0, %v2088
  %v2090 = vrot.slane %v2085, %v2089
  %v2096 = vunpack.c.l.b16 %v2081
  %v2097 = vunpack.c.l.b16 %v2082
  %v2098 = vunpack.c.l.b16 %v2083
  %v2099 = vunpack.c.l.b16 %v2084
  %v2100 = vpack.c.b16 %v2097, %v2096
  %v2101 = vpack.c.b16 %v2099, %v2098
  %vm2104 = vcmask 261120
  %v2106 = vsel %vm2104, %v2080, 0
  %2108 = vmatprep.subr.bf16.mxu0 0
  %2109 = vmatpush1.bf16.msra.mxu0 0
  %2110 = vmatprep.subr.bf16.mxu0 0
  %2111 = vmatpush1.bf16.msra.mxu0 0
  %2112 = vmatprep.subr.bf16.mxu0 0
  %2113 = vmatpush1.bf16.msra.mxu0 0
  %2114 = vmatprep.subr.bf16.mxu0 0
  %2115 = vmatpush1.bf16.msra.mxu0 0
  %2116 = vmatprep.subr.bf16.mxu0 0
  %2117 = vmatpush1.bf16.msra.mxu0 0
  %2118 = vmatprep.subr.bf16.mxu0 0
  %2119 = vmatpush1.bf16.msra.mxu0 0
  %2120 = vmatprep.subr.bf16.mxu0 0
  %2121 = vmatpush1.bf16.msra.mxu0 %v2101
  %2122 = vmatprep.subr.bf16.mxu0 0
  %2123 = vmatpush1.bf16.msra.mxu0 %v2100
  %2124 = vmatprep.subr.bf16.mxu0 0
  %2125 = vmatpush2.bf16.msra.mxu0 0
  %2126 = vmatprep.subr.bf16.mxu0 0
  %2127 = vmatpush2.bf16.msra.mxu0 0
  %2128 = vmatprep.subr.bf16.mxu0 0
  %2129 = vmatpush2.bf16.msra.mxu0 0
  %2130 = vmatprep.subr.bf16.mxu0 0
  %2131 = vmatpush2.bf16.msra.mxu0 0
  %2132 = vmatprep.subr.bf16.mxu0 0
  %2133 = vmatpush2.bf16.msra.mxu0 0
  %2134 = vmatprep.subr.bf16.mxu0 0
  %2135 = vmatpush2.bf16.msra.mxu0 0
  %2136 = vmatprep.subr.bf16.mxu0 0
  %2137 = vmatpush2.bf16.msra.mxu0 0
  %2138 = vmatprep.subr.bf16.mxu0 0
  %2139 = vmatpush2.bf16.msra.mxu0 0
  %2140 = vmatprep.mubr.bf16.mxu0 0
  %2141 = vmatmul.mubr.bf16.gmra.mxu0 %v2106
  %v2142 = vpop.f32.mrf.mxu0
  %v2143 = vadd.f32 %v2090, %v2142
  %v2144 = vpop.f32.mrf.mxu0
  %v2145 = vpop.f32.mrf.mxu0
  %v2146 = vpop.f32.mrf.mxu0
  %2147 = vdwg.mxu0
  %2148 = vst [vmem:[%s7] sm:$0xf] %v2143
  // Predicated region
  $region30: #{siamese_forward.1} parent=0 // pred_check
    _
  $region31: #{siamese_forward.1} parent=0 // pred_check_branch
    %2150 = sbr.rel (0) target = $region33
  $region32: #{siamese_forward.1} parent=0 // pred_region
    _
  $region33: #{siamese_forward.1} parent=0 // pred_fallthru
    _
  // Predicated region
  $region34: #{siamese_forward.1} parent=0 // pred_check
    _
  $region35: #{siamese_forward.1} parent=0 // pred_check_branch
    %2152 = sbr.rel (0) target = $region37
  $region36: #{siamese_forward.1} parent=0 // pred_region
    _
  $region37: #{siamese_forward.1} parent=0 // pred_fallthru
    _

</llo_original>
